<compile_context>
chip_gen: v7x
topology: tpu7x:2x2x1
jax: 0.10.0
libtpu: 0.0.40
codegen_flags: <defaults>
</compile_context>

<pallas_src>
import functools

import jax
import jax.numpy as jnp
from jax import lax
from jax.experimental import pallas as pl
from jax.experimental.pallas import tpu as pltpu

LANE = 128


def _round_up(x, m):
    return (x + m - 1) // m * m


def _make_kernel(B, H, W, Cin, Ch_p, Cout, stride, residual, mxu_dtype):
    H_out = (H - 1) // stride + 1
    W_out = (W - 1) // stride + 1

    def kernel(x_ref, w1_ref, b1_ref, dw_ref, b2_ref, w2_ref, b3_ref,
               o_ref, acc_ref):
        x = x_ref[...]                                     # (B, H, W, Cin) f32

        # ---- conv1: 1x1 expand (BN scale pre-folded into w1) + shift + ReLU6
        h1 = jnp.dot(x.reshape(B * H * W, Cin).astype(mxu_dtype),
                     w1_ref[...],                          # bf16 weights (host cast)
                     preferred_element_type=jnp.float32)   # (B*H*W, Ch_p) f32
        h1 = jnp.clip(h1 + b1_ref[...], 0.0, 6.0)
        h1_3d = h1.reshape(B * H, W, Ch_p)

        # ---- depthwise 3x3, pad=1, stride (BN scale pre-folded into dw) ----
        dwk = dw_ref[...]                                  # (9, Ch_p) f32

        # Two tiny border masks, precomputed once (broadcast over B*H and Ch).
        w_idx = lax.broadcasted_iota(jnp.int32, (1, W, 1), 1)
        if stride > 1:
            w_idx = w_idx[:, :(W_out - 1) * stride + 1:stride, :]
        mask_l = w_idx >= 1          # valid output cols for kw == 0 (off = -1)
        mask_r = w_idx <= W - 2      # valid output cols for kw == 2 (off = +1)

        first = True
        for kw in (1, 0, 2):         # center column first: its kh==1 tap
            off = kw - 1             # covers every output row -> plain '='
            if off == 0:
                sw = h1_3d
            else:
                # W shift on the sublane axis via the XLU (free-ish slot).
                sw = pltpu.roll(h1_3d, shift=(-off) % W, axis=1)
            if stride > 1:
                # Fold the stride into the tap: only W_out columns are touched.
                sw = sw[:, :(W_out - 1) * stride + 1:stride, :]
            if off == -1:
                sw = jnp.where(mask_l, sw, 0.0)
            elif off == 1:
                sw = jnp.where(mask_r, sw, 0.0)
            sw4 = sw.reshape(B, H, W_out, Ch_p)

            for kh in (1, 0, 2):
                idx = kh * 3 + kw
                # valid output-row range for this kh tap (implicit zero pad).
                lo = 0 if kh >= 1 else -(-(1 - kh) // stride)
                hi = min(H_out, (H - kh) // stride + 1)
                n = hi - lo
                src = lo * stride + kh - 1
                if stride == 1:
                    tap = sw4[:, src:src + n, :, :]
                else:
                    tap = sw4[:, src:src + (n - 1) * stride + 1:stride, :, :]
                term = tap * dwk[idx:idx + 1, :]           # (1, Ch_p) broadcast
                if first:
                    acc_ref[...] = term                    # kh==1 spans all rows
                    first = False
                else:
                    acc_ref[:, lo:hi, :, :] += term

        h2 = jnp.clip(acc_ref[...] + b2_ref[...], 0.0, 6.0)  # (B,H_out,W_out,Ch_p)

        # ---- conv2: 1x1 project (BN scale pre-folded into w2) + shift ----
        h3 = jnp.dot(h2.reshape(B * H_out * W_out, Ch_p).astype(mxu_dtype),
                     w2_ref[...],                          # bf16 weights
                     preferred_element_type=jnp.float32)   # (.., Cout)
        out = (h3 + b3_ref[...]).reshape(B, H_out, W_out, Cout)

        if residual:
            out = out + x                                  # Cin == Cout, stride 1

        o_ref[...] = out.astype(o_ref.dtype)

    return kernel, H_out, W_out


@functools.partial(jax.jit, static_argnames=("stride", "mxu_dtype"))
def inverse_residual_block(x_nchw, w1, dw, w2, sb1, sb2, sb3, stride=1,
                           mxu_dtype=jnp.bfloat16):
    """InverseResidualBlock forward (inference-mode BN).

    w1: (Cin, Ch) 1x1 expand; dw: (Ch, 3, 3) depthwise; w2: (Ch, Cout) project.
    sb1/sb2/sb3: folded BN (scale, shift) pairs for the three BN layers.
    mxu_dtype: bf16 by default (full-rate MXU on v6e/v7x, f32 accumulation);
    pass jnp.float32 for exact-parity debugging.
    """
    N, Cin, H, W = x_nchw.shape
    Ch = w1.shape[1]
    Cout = w2.shape[1]
    residual = (Cin == Cout) and (stride == 1)

    s1, b1 = sb1
    s2, b2 = sb2
    s3, b3 = sb3

    Ch_p = _round_up(Ch, LANE)

    # Fold the BN scales into the conv weights on the host; only per-channel
    # shift adds remain inside the kernel.  Hidden-channel dim is lane-padded;
    # input/output channel dims stay unpadded (full-dim blocks).
    w1f = jnp.pad(w1 * s1[None, :], ((0, 0), (0, Ch_p - Ch))).astype(mxu_dtype)
    w2f = jnp.pad(w2 * s3[None, :], ((0, Ch_p - Ch), (0, 0))).astype(mxu_dtype)
    # Depthwise weights stay f32: they feed the VALU path (no bf16 VPU on v5e).
    dwf = jnp.pad(jnp.transpose(dw, (1, 2, 0)).reshape(9, Ch) * s2[None, :],
                  ((0, 0), (0, Ch_p - Ch))).astype(jnp.float32)
    b1p = jnp.pad(b1.reshape(1, Ch), ((0, 0), (0, Ch_p - Ch)))
    b2p = jnp.pad(b2.reshape(1, Ch), ((0, 0), (0, Ch_p - Ch)))
    b3p = b3.reshape(1, Cout)

    # NCHW -> NHWC (channels on lanes); no channel padding in HBM.
    x = jnp.transpose(x_nchw, (0, 2, 3, 1)).astype(jnp.float32)

    H_out = (H - 1) // stride + 1
    W_out = (W - 1) // stride + 1

    # ---- generation-aware VMEM budgeting / batch tiling ----
    try:
        info = pltpu.get_tpu_info()
        vmem_phys = int(getattr(info, "vmem_capacity_bytes", 0)) or 64 * 2 ** 20
    except Exception:  # conservative fallback (v7x-sized VMEM)
        vmem_phys = 64 * 2 ** 20
    # Live set per image: x block (x2 double-buffer), h1 + one rolled/masked
    # copy + headroom, acc scratch, out block (x2 double-buffer); all f32.
    per_img = 4 * (2 * H * W * Cin + 3 * H * W * Ch_p
                   + H_out * W_out * Ch_p + 2 * H_out * W_out * Cout)
    weight_bytes = 2 * (w1f.size * w1f.dtype.itemsize
                        + w2f.size * w2f.dtype.itemsize
                        + dwf.size * 4 + (2 * Ch_p + Cout) * 4)
    budget = int(0.4 * vmem_phys)
    cap_imgs = max(1, (budget - weight_bytes) // per_img)
    m_imgs = max(1, -(-1024 // (H * W)))     # aim for M ~ 1K rows per matmul
    B_tile = max(1, min(N, m_imgs, cap_imgs))
    if N >= 2:                               # >=2 grid steps: dual-TC on v7x
        B_tile = min(B_tile, max(1, N // 2))  # and DMA double-buffer overlap
    while N % B_tile:                        # keep blocks exact (no ragged tail)
        B_tile -= 1
    grid = (N // B_tile,)

    kernel, H_out, W_out = _make_kernel(B_tile, H, W, Cin, Ch_p, Cout,
                                        stride, residual, mxu_dtype)

    def const2d(a):
        # Constant (never re-fetched) operand: full-array block.
        # TODO(synk): single-buffer these via pipeline_mode once Buffered(1)
        #             is confirmed supported, to halve their VMEM footprint.
        return pl.BlockSpec(a.shape, lambda n: (0, 0))

    out = pl.pallas_call(
        kernel,
        out_shape=jax.ShapeDtypeStruct((N, H_out, W_out, Cout), jnp.float32),
        grid_spec=pltpu.PrefetchScalarGridSpec(
            num_scalar_prefetch=0,
            grid=grid,
            in_specs=[
                pl.BlockSpec((B_tile, H, W, Cin), lambda n: (n, 0, 0, 0)),
                const2d(w1f), const2d(b1p), const2d(dwf), const2d(b2p),
                const2d(w2f), const2d(b3p),
            ],
            out_specs=pl.BlockSpec((B_tile, H_out, W_out, Cout),
                                   lambda n: (n, 0, 0, 0)),
            scratch_shapes=[pltpu.VMEM((B_tile, H_out, W_out, Ch_p),
                                       jnp.float32)],
        ),
        compiler_params=pltpu.CompilerParams(
            dimension_semantics=("parallel",),
            vmem_limit_bytes=int(0.6 * vmem_phys)),
    )(x, w1f, b1p, dwf, b2p, w2f, b3p)

    # TODO(synk): keep NHWC downstream to avoid this transpose HBM pass.
    return jnp.transpose(out, (0, 3, 1, 2))    # back to NCHW


# ---------------- parameter init & pure-JAX reference ----------------

def _bn_fold(gamma, beta, mean, var, eps=1e-5):
    scale = gamma / jnp.sqrt(var + eps)
    shift = beta - mean * scale
    return scale, shift


def init_params(key, in_channels, out_channels, expansion_factor):
    Ch = in_channels * expansion_factor
    keys = jax.random.split(key, 15)
    w1 = jax.random.normal(keys[0], (in_channels, Ch), jnp.float32) * 0.1
    dw = jax.random.normal(keys[1], (Ch, 3, 3), jnp.float32) * 0.1
    w2 = jax.random.normal(keys[2], (Ch, out_channels), jnp.float32) * 0.1

    def bn(k1, k2, k3, k4, C):
        gamma = jax.random.uniform(k1, (C,), jnp.float32, 0.5, 1.5)
        beta = jax.random.normal(k2, (C,), jnp.float32) * 0.1
        mean = jax.random.normal(k3, (C,), jnp.float32) * 0.1
        var = jax.random.uniform(k4, (C,), jnp.float32, 0.5, 1.5)
        return gamma, beta, mean, var

    bn1 = bn(*keys[3:7], Ch)
    bn2 = bn(*keys[7:11], Ch)
    bn3 = bn(*keys[11:15], out_channels)
    return w1, dw, w2, bn1, bn2, bn3


def reference_forward(x, w1, dw, w2, bn1, bn2, bn3, stride, residual, eps=1e-5):
    Cin = x.shape[1]
    Ch = w1.shape[1]
    Cout = w2.shape[1]

    def bn_apply(y, bn):
        g, b, m, v = bn
        return ((y - m[None, :, None, None])
                / jnp.sqrt(v + eps)[None, :, None, None]
                * g[None, :, None, None] + b[None, :, None, None])

    dn = ('NCHW', 'OIHW', 'NCHW')
    # conv1 (1x1) + BN + ReLU6
    w1_oihw = w1.T.reshape(Ch, Cin, 1, 1)
    y = lax.conv_general_dilated(x, w1_oihw, (1, 1), 'VALID',
                                 dimension_numbers=dn)
    y = jnp.clip(bn_apply(y, bn1), 0.0, 6.0)
    # depthwise 3x3 + BN + ReLU6
    dw_oihw = dw.reshape(Ch, 1, 3, 3)
    y = lax.conv_general_dilated(y, dw_oihw, (stride, stride),
                                 ((1, 1), (1, 1)),
                                 feature_group_count=Ch,
                                 dimension_numbers=dn)
    y = jnp.clip(bn_apply(y, bn2), 0.0, 6.0)
    # conv2 (1x1) + BN (no activation)
    w2_oihw = w2.T.reshape(Cout, Ch, 1, 1)
    y = lax.conv_general_dilated(y, w2_oihw, (1, 1), 'VALID',
                                 dimension_numbers=dn)
    y = bn_apply(y, bn3)
    if residual:
        y = y + x
    return y


if __name__ == "__main__":
    key = jax.random.PRNGKey(0)
    N, Cin, H, W = 2, 4, 16, 16
    Cout, expansion, stride = 4, 6, 1          # residual path active
    Ch = Cin * expansion

    kx, kp = jax.random.split(key)
    x = jax.random.normal(kx, (N, Cin, H, W), jnp.float32)
    w1, dw, w2, bn1, bn2, bn3 = init_params(kp, Cin, Cout, expansion)

    sb1 = _bn_fold(*bn1)
    sb2 = _bn_fold(*bn2)
    sb3 = _bn_fold(*bn3)

    out = inverse_residual_block(x, w1, dw, w2, sb1, sb2, sb3, stride=stride)
    out = jax.block_until_ready(out)

    ref = reference_forward(x, w1, dw, w2, bn1, bn2, bn3, stride,
                            residual=(Cin == Cout and stride == 1))
    assert out.shape == ref.shape, (out.shape, ref.shape)
    err = float(jnp.max(jnp.abs(out - ref)))
    # bf16 MXU path (f32 accumulation) vs f32 reference -> loosened tolerance.
    assert jnp.allclose(out, ref, atol=2e-2, rtol=2e-2), f"max abs err {err}"

    print("KERNEL_OK")
</pallas_src>

<mosaic_0001>
module attributes {stable_mosaic.version = 11 : i64} {
  func.func @kernel(%arg0: i32, %arg1: memref<1x16x16x4xf32, #tpu.memory_space<vmem>>, %arg2: memref<4x128xbf16, #tpu.memory_space<vmem>>, %arg3: memref<1x128xf32, #tpu.memory_space<vmem>>, %arg4: memref<9x128xf32, #tpu.memory_space<vmem>>, %arg5: memref<1x128xf32, #tpu.memory_space<vmem>>, %arg6: memref<128x4xbf16, #tpu.memory_space<vmem>>, %arg7: memref<1x4xf32, #tpu.memory_space<vmem>>, %arg8: memref<1x16x16x4xf32, #tpu.memory_space<vmem>>, %arg9: memref<1x16x16x128xf32, #tpu.memory_space<vmem>>) attributes {dimension_semantics = [#tpu.dimension_semantics<parallel>], iteration_bounds = array<i64: 2>, scalar_prefetch = 0 : i64, scratch_operands = 1 : i64, tpu.core_type = #tpu.core_type<tc>, window_params = [{transform_indices = @transform_0, window_bounds = array<i64: 1, 16, 16, 4>}, {pipeline_mode = #tpu.pipeline_mode<synchronous>, transform_indices = @transform_1, window_bounds = array<i64: 4, 128>}, {pipeline_mode = #tpu.pipeline_mode<synchronous>, transform_indices = @transform_2, window_bounds = array<i64: 1, 128>}, {pipeline_mode = #tpu.pipeline_mode<synchronous>, transform_indices = @transform_3, window_bounds = array<i64: 9, 128>}, {pipeline_mode = #tpu.pipeline_mode<synchronous>, transform_indices = @transform_4, window_bounds = array<i64: 1, 128>}, {pipeline_mode = #tpu.pipeline_mode<synchronous>, transform_indices = @transform_5, window_bounds = array<i64: 128, 4>}, {pipeline_mode = #tpu.pipeline_mode<synchronous>, transform_indices = @transform_6, window_bounds = array<i64: 1, 4>}, {transform_indices = @transform_7, window_bounds = array<i64: 1, 16, 16, 4>}]} {
    %c0 = arith.constant 0 : index
    %c0_0 = arith.constant 0 : index
    %c0_1 = arith.constant 0 : index
    %c0_2 = arith.constant 0 : index
    %0 = vector.load %arg1[%c0, %c0_0, %c0_1, %c0_2] : memref<1x16x16x4xf32, #tpu.memory_space<vmem>>, vector<1x16x16x4xf32>
    %1 = vector.shape_cast %0 : vector<1x16x16x4xf32> to vector<256x4xf32>
    %2 = arith.truncf %1 : vector<256x4xf32> to vector<256x4xbf16>
    %c0_3 = arith.constant 0 : index
    %c0_4 = arith.constant 0 : index
    %3 = vector.load %arg2[%c0_3, %c0_4] : memref<4x128xbf16, #tpu.memory_space<vmem>>, vector<4x128xbf16>
    %cst = arith.constant dense<0.000000e+00> : vector<256x128xf32>
    %4 = tpu.matmul %2, %3, %cst {dimension_numbers = #tpu.dot_dimension_numbers<[1], [0], [0], [1], [0, 0, 1, 1], [], []>} : vector<256x4xbf16>, vector<4x128xbf16>, vector<256x128xf32> -> vector<256x128xf32>
    %c0_5 = arith.constant 0 : index
    %c0_6 = arith.constant 0 : index
    %5 = vector.load %arg3[%c0_5, %c0_6] : memref<1x128xf32, #tpu.memory_space<vmem>>, vector<1x128xf32>
    %6 = vector.broadcast %5 : vector<1x128xf32> to vector<256x128xf32>
    %7 = arith.addf %4, %6 : vector<256x128xf32>
    %cst_7 = arith.constant 0.000000e+00 : f32
    %cst_8 = arith.constant 6.000000e+00 : f32
    %8 = vector.broadcast %cst_7 : f32 to vector<256x128xf32>
    %9 = arith.maximumf %8, %7 : vector<256x128xf32>
    %10 = vector.broadcast %cst_8 : f32 to vector<256x128xf32>
    %11 = arith.minimumf %10, %9 : vector<256x128xf32>
    %12 = vector.shape_cast %11 : vector<256x128xf32> to vector<16x16x128xf32>
    %c0_9 = arith.constant 0 : index
    %c0_10 = arith.constant 0 : index
    %13 = vector.load %arg4[%c0_9, %c0_10] : memref<9x128xf32, #tpu.memory_space<vmem>>, vector<9x128xf32>
    %14 = tpu.iota {dimensions = array<i32: 1>} : vector<1x16x1xi32>
    %c1_i32 = arith.constant 1 : i32
    %15 = vector.broadcast %c1_i32 : i32 to vector<1x16x1xi32>
    %16 = arith.cmpi sge, %14, %15 : vector<1x16x1xi32>
    %c14_i32 = arith.constant 14 : i32
    %17 = vector.broadcast %c14_i32 : i32 to vector<1x16x1xi32>
    %18 = arith.cmpi sle, %14, %17 : vector<1x16x1xi32>
    %19 = vector.shape_cast %12 : vector<16x16x128xf32> to vector<1x16x16x128xf32>
    %20 = vector.extract_strided_slice %13 {offsets = [4, 0], sizes = [1, 128], strides = [1, 1]} : vector<9x128xf32> to vector<1x128xf32>
    %21 = vector.shape_cast %20 : vector<1x128xf32> to vector<1x1x1x128xf32>
    %22 = vector.broadcast %21 : vector<1x1x1x128xf32> to vector<1x16x16x128xf32>
    %23 = arith.mulf %19, %22 : vector<1x16x16x128xf32>
    %c0_11 = arith.constant 0 : index
    %c0_12 = arith.constant 0 : index
    %c0_13 = arith.constant 0 : index
    %c0_14 = arith.constant 0 : index
    %24 = vector.load %arg9[%c0_11, %c0_12, %c0_13, %c0_14] : memref<1x16x16x128xf32, #tpu.memory_space<vmem>>, vector<1x16x16x128xf32>
    tpu.vector_store %arg9[%c0_11, %c0_12, %c0_13, %c0_14], %23 {strides = array<i32>} : memref<1x16x16x128xf32, #tpu.memory_space<vmem>>, vector<1x16x16x128xf32>,
    %25 = vector.extract_strided_slice %19 {offsets = [0, 0, 0, 0], sizes = [1, 15, 16, 128], strides = [1, 1, 1, 1]} : vector<1x16x16x128xf32> to vector<1x15x16x128xf32>
    %26 = vector.extract_strided_slice %13 {offsets = [1, 0], sizes = [1, 128], strides = [1, 1]} : vector<9x128xf32> to vector<1x128xf32>
    %27 = vector.shape_cast %26 : vector<1x128xf32> to vector<1x1x1x128xf32>
    %28 = vector.broadcast %27 : vector<1x1x1x128xf32> to vector<1x15x16x128xf32>
    %29 = arith.mulf %25, %28 : vector<1x15x16x128xf32>
    %c0_15 = arith.constant 0 : index
    %c1 = arith.constant 1 : index
    %c0_16 = arith.constant 0 : index
    %c0_17 = arith.constant 0 : index
    %30 = vector.load %arg9[%c0_15, %c1, %c0_16, %c0_17] : memref<1x16x16x128xf32, #tpu.memory_space<vmem>>, vector<1x15x16x128xf32>
    %31 = arith.addf %30, %29 : vector<1x15x16x128xf32>
    %c0_18 = arith.constant 0 : index
    %c1_19 = arith.constant 1 : index
    %c0_20 = arith.constant 0 : index
    %c0_21 = arith.constant 0 : index
    %32 = vector.load %arg9[%c0_18, %c1_19, %c0_20, %c0_21] : memref<1x16x16x128xf32, #tpu.memory_space<vmem>>, vector<1x15x16x128xf32>
    tpu.vector_store %arg9[%c0_18, %c1_19, %c0_20, %c0_21], %31 {strides = array<i32>} : memref<1x16x16x128xf32, #tpu.memory_space<vmem>>, vector<1x15x16x128xf32>,
    %33 = vector.extract_strided_slice %19 {offsets = [0, 1, 0, 0], sizes = [1, 15, 16, 128], strides = [1, 1, 1, 1]} : vector<1x16x16x128xf32> to vector<1x15x16x128xf32>
    %34 = vector.extract_strided_slice %13 {offsets = [7, 0], sizes = [1, 128], strides = [1, 1]} : vector<9x128xf32> to vector<1x128xf32>
    %35 = vector.shape_cast %34 : vector<1x128xf32> to vector<1x1x1x128xf32>
    %36 = vector.broadcast %35 : vector<1x1x1x128xf32> to vector<1x15x16x128xf32>
    %37 = arith.mulf %33, %36 : vector<1x15x16x128xf32>
    %c0_22 = arith.constant 0 : index
    %c0_23 = arith.constant 0 : index
    %c0_24 = arith.constant 0 : index
    %c0_25 = arith.constant 0 : index
    %38 = vector.load %arg9[%c0_22, %c0_23, %c0_24, %c0_25] : memref<1x16x16x128xf32, #tpu.memory_space<vmem>>, vector<1x15x16x128xf32>
    %39 = arith.addf %38, %37 : vector<1x15x16x128xf32>
    %c0_26 = arith.constant 0 : index
    %c0_27 = arith.constant 0 : index
    %c0_28 = arith.constant 0 : index
    %c0_29 = arith.constant 0 : index
    %40 = vector.load %arg9[%c0_26, %c0_27, %c0_28, %c0_29] : memref<1x16x16x128xf32, #tpu.memory_space<vmem>>, vector<1x15x16x128xf32>
    tpu.vector_store %arg9[%c0_26, %c0_27, %c0_28, %c0_29], %39 {strides = array<i32>} : memref<1x16x16x128xf32, #tpu.memory_space<vmem>>, vector<1x15x16x128xf32>,
    %c1_i32_30 = arith.constant 1 : i32
    %41 = tpu.dynamic_rotate %12 by %c1_i32_30 dim 1 : vector<16x16x128xf32>, i32 -> vector<16x16x128xf32>
    %cst_31 = arith.constant 0.000000e+00 : f32
    %42 = vector.shape_cast %16 : vector<1x16x1xi1> to vector<1x16x1xi1>
    %43 = vector.broadcast %42 : vector<1x16x1xi1> to vector<16x16x128xi1>
    %44 = vector.broadcast %cst_31 : f32 to vector<16x16x128xf32>
    %45 = arith.select %43, %41, %44 : vector<16x16x128xi1>, vector<16x16x128xf32>
    %46 = vector.shape_cast %45 : vector<16x16x128xf32> to vector<1x16x16x128xf32>
    %47 = vector.extract_strided_slice %13 {offsets = [3, 0], sizes = [1, 128], strides = [1, 1]} : vector<9x128xf32> to vector<1x128xf32>
    %48 = vector.shape_cast %47 : vector<1x128xf32> to vector<1x1x1x128xf32>
    %49 = vector.broadcast %48 : vector<1x1x1x128xf32> to vector<1x16x16x128xf32>
    %50 = arith.mulf %46, %49 : vector<1x16x16x128xf32>
    %c0_32 = arith.constant 0 : index
    %c0_33 = arith.constant 0 : index
    %c0_34 = arith.constant 0 : index
    %c0_35 = arith.constant 0 : index
    %51 = vector.load %arg9[%c0_32, %c0_33, %c0_34, %c0_35] : memref<1x16x16x128xf32, #tpu.memory_space<vmem>>, vector<1x16x16x128xf32>
    %52 = arith.addf %51, %50 : vector<1x16x16x128xf32>
    %c0_36 = arith.constant 0 : index
    %c0_37 = arith.constant 0 : index
    %c0_38 = arith.constant 0 : index
    %c0_39 = arith.constant 0 : index
    %53 = vector.load %arg9[%c0_36, %c0_37, %c0_38, %c0_39] : memref<1x16x16x128xf32, #tpu.memory_space<vmem>>, vector<1x16x16x128xf32>
    tpu.vector_store %arg9[%c0_36, %c0_37, %c0_38, %c0_39], %52 {strides = array<i32>} : memref<1x16x16x128xf32, #tpu.memory_space<vmem>>, vector<1x16x16x128xf32>,
    %54 = vector.extract_strided_slice %46 {offsets = [0, 0, 0, 0], sizes = [1, 15, 16, 128], strides = [1, 1, 1, 1]} : vector<1x16x16x128xf32> to vector<1x15x16x128xf32>
    %55 = vector.extract_strided_slice %13 {offsets = [0, 0], sizes = [1, 128], strides = [1, 1]} : vector<9x128xf32> to vector<1x128xf32>
    %56 = vector.shape_cast %55 : vector<1x128xf32> to vector<1x1x1x128xf32>
    %57 = vector.broadcast %56 : vector<1x1x1x128xf32> to vector<1x15x16x128xf32>
    %58 = arith.mulf %54, %57 : vector<1x15x16x128xf32>
    %c0_40 = arith.constant 0 : index
    %c1_41 = arith.constant 1 : index
    %c0_42 = arith.constant 0 : index
    %c0_43 = arith.constant 0 : index
    %59 = vector.load %arg9[%c0_40, %c1_41, %c0_42, %c0_43] : memref<1x16x16x128xf32, #tpu.memory_space<vmem>>, vector<1x15x16x128xf32>
    %60 = arith.addf %59, %58 : vector<1x15x16x128xf32>
    %c0_44 = arith.constant 0 : index
    %c1_45 = arith.constant 1 : index
    %c0_46 = arith.constant 0 : index
    %c0_47 = arith.constant 0 : index
    %61 = vector.load %arg9[%c0_44, %c1_45, %c0_46, %c0_47] : memref<1x16x16x128xf32, #tpu.memory_space<vmem>>, vector<1x15x16x128xf32>
    tpu.vector_store %arg9[%c0_44, %c1_45, %c0_46, %c0_47], %60 {strides = array<i32>} : memref<1x16x16x128xf32, #tpu.memory_space<vmem>>, vector<1x15x16x128xf32>,
    %62 = vector.extract_strided_slice %46 {offsets = [0, 1, 0, 0], sizes = [1, 15, 16, 128], strides = [1, 1, 1, 1]} : vector<1x16x16x128xf32> to vector<1x15x16x128xf32>
    %63 = vector.extract_strided_slice %13 {offsets = [6, 0], sizes = [1, 128], strides = [1, 1]} : vector<9x128xf32> to vector<1x128xf32>
    %64 = vector.shape_cast %63 : vector<1x128xf32> to vector<1x1x1x128xf32>
    %65 = vector.broadcast %64 : vector<1x1x1x128xf32> to vector<1x15x16x128xf32>
    %66 = arith.mulf %62, %65 : vector<1x15x16x128xf32>
    %c0_48 = arith.constant 0 : index
    %c0_49 = arith.constant 0 : index
    %c0_50 = arith.constant 0 : index
    %c0_51 = arith.constant 0 : index
    %67 = vector.load %arg9[%c0_48, %c0_49, %c0_50, %c0_51] : memref<1x16x16x128xf32, #tpu.memory_space<vmem>>, vector<1x15x16x128xf32>
    %68 = arith.addf %67, %66 : vector<1x15x16x128xf32>
    %c0_52 = arith.constant 0 : index
    %c0_53 = arith.constant 0 : index
    %c0_54 = arith.constant 0 : index
    %c0_55 = arith.constant 0 : index
    %69 = vector.load %arg9[%c0_52, %c0_53, %c0_54, %c0_55] : memref<1x16x16x128xf32, #tpu.memory_space<vmem>>, vector<1x15x16x128xf32>
    tpu.vector_store %arg9[%c0_52, %c0_53, %c0_54, %c0_55], %68 {strides = array<i32>} : memref<1x16x16x128xf32, #tpu.memory_space<vmem>>, vector<1x15x16x128xf32>,
    %c15_i32 = arith.constant 15 : i32
    %70 = tpu.dynamic_rotate %12 by %c15_i32 dim 1 : vector<16x16x128xf32>, i32 -> vector<16x16x128xf32>
    %cst_56 = arith.constant 0.000000e+00 : f32
    %71 = vector.shape_cast %18 : vector<1x16x1xi1> to vector<1x16x1xi1>
    %72 = vector.broadcast %71 : vector<1x16x1xi1> to vector<16x16x128xi1>
    %73 = vector.broadcast %cst_56 : f32 to vector<16x16x128xf32>
    %74 = arith.select %72, %70, %73 : vector<16x16x128xi1>, vector<16x16x128xf32>
    %75 = vector.shape_cast %74 : vector<16x16x128xf32> to vector<1x16x16x128xf32>
    %76 = vector.extract_strided_slice %13 {offsets = [5, 0], sizes = [1, 128], strides = [1, 1]} : vector<9x128xf32> to vector<1x128xf32>
    %77 = vector.shape_cast %76 : vector<1x128xf32> to vector<1x1x1x128xf32>
    %78 = vector.broadcast %77 : vector<1x1x1x128xf32> to vector<1x16x16x128xf32>
    %79 = arith.mulf %75, %78 : vector<1x16x16x128xf32>
    %c0_57 = arith.constant 0 : index
    %c0_58 = arith.constant 0 : index
    %c0_59 = arith.constant 0 : index
    %c0_60 = arith.constant 0 : index
    %80 = vector.load %arg9[%c0_57, %c0_58, %c0_59, %c0_60] : memref<1x16x16x128xf32, #tpu.memory_space<vmem>>, vector<1x16x16x128xf32>
    %81 = arith.addf %80, %79 : vector<1x16x16x128xf32>
    %c0_61 = arith.constant 0 : index
    %c0_62 = arith.constant 0 : index
    %c0_63 = arith.constant 0 : index
    %c0_64 = arith.constant 0 : index
    %82 = vector.load %arg9[%c0_61, %c0_62, %c0_63, %c0_64] : memref<1x16x16x128xf32, #tpu.memory_space<vmem>>, vector<1x16x16x128xf32>
    tpu.vector_store %arg9[%c0_61, %c0_62, %c0_63, %c0_64], %81 {strides = array<i32>} : memref<1x16x16x128xf32, #tpu.memory_space<vmem>>, vector<1x16x16x128xf32>,
    %83 = vector.extract_strided_slice %75 {offsets = [0, 0, 0, 0], sizes = [1, 15, 16, 128], strides = [1, 1, 1, 1]} : vector<1x16x16x128xf32> to vector<1x15x16x128xf32>
    %84 = vector.extract_strided_slice %13 {offsets = [2, 0], sizes = [1, 128], strides = [1, 1]} : vector<9x128xf32> to vector<1x128xf32>
    %85 = vector.shape_cast %84 : vector<1x128xf32> to vector<1x1x1x128xf32>
    %86 = vector.broadcast %85 : vector<1x1x1x128xf32> to vector<1x15x16x128xf32>
    %87 = arith.mulf %83, %86 : vector<1x15x16x128xf32>
    %c0_65 = arith.constant 0 : index
    %c1_66 = arith.constant 1 : index
    %c0_67 = arith.constant 0 : index
    %c0_68 = arith.constant 0 : index
    %88 = vector.load %arg9[%c0_65, %c1_66, %c0_67, %c0_68] : memref<1x16x16x128xf32, #tpu.memory_space<vmem>>, vector<1x15x16x128xf32>
    %89 = arith.addf %88, %87 : vector<1x15x16x128xf32>
    %c0_69 = arith.constant 0 : index
    %c1_70 = arith.constant 1 : index
    %c0_71 = arith.constant 0 : index
    %c0_72 = arith.constant 0 : index
    %90 = vector.load %arg9[%c0_69, %c1_70, %c0_71, %c0_72] : memref<1x16x16x128xf32, #tpu.memory_space<vmem>>, vector<1x15x16x128xf32>
    tpu.vector_store %arg9[%c0_69, %c1_70, %c0_71, %c0_72], %89 {strides = array<i32>} : memref<1x16x16x128xf32, #tpu.memory_space<vmem>>, vector<1x15x16x128xf32>,
    %91 = vector.extract_strided_slice %75 {offsets = [0, 1, 0, 0], sizes = [1, 15, 16, 128], strides = [1, 1, 1, 1]} : vector<1x16x16x128xf32> to vector<1x15x16x128xf32>
    %92 = vector.extract_strided_slice %13 {offsets = [8, 0], sizes = [1, 128], strides = [1, 1]} : vector<9x128xf32> to vector<1x128xf32>
    %93 = vector.shape_cast %92 : vector<1x128xf32> to vector<1x1x1x128xf32>
    %94 = vector.broadcast %93 : vector<1x1x1x128xf32> to vector<1x15x16x128xf32>
    %95 = arith.mulf %91, %94 : vector<1x15x16x128xf32>
    %c0_73 = arith.constant 0 : index
    %c0_74 = arith.constant 0 : index
    %c0_75 = arith.constant 0 : index
    %c0_76 = arith.constant 0 : index
    %96 = vector.load %arg9[%c0_73, %c0_74, %c0_75, %c0_76] : memref<1x16x16x128xf32, #tpu.memory_space<vmem>>, vector<1x15x16x128xf32>
    %97 = arith.addf %96, %95 : vector<1x15x16x128xf32>
    %c0_77 = arith.constant 0 : index
    %c0_78 = arith.constant 0 : index
    %c0_79 = arith.constant 0 : index
    %c0_80 = arith.constant 0 : index
    %98 = vector.load %arg9[%c0_77, %c0_78, %c0_79, %c0_80] : memref<1x16x16x128xf32, #tpu.memory_space<vmem>>, vector<1x15x16x128xf32>
    tpu.vector_store %arg9[%c0_77, %c0_78, %c0_79, %c0_80], %97 {strides = array<i32>} : memref<1x16x16x128xf32, #tpu.memory_space<vmem>>, vector<1x15x16x128xf32>,
    %c0_81 = arith.constant 0 : index
    %c0_82 = arith.constant 0 : index
    %c0_83 = arith.constant 0 : index
    %c0_84 = arith.constant 0 : index
    %99 = vector.load %arg9[%c0_81, %c0_82, %c0_83, %c0_84] : memref<1x16x16x128xf32, #tpu.memory_space<vmem>>, vector<1x16x16x128xf32>
    %c0_85 = arith.constant 0 : index
    %c0_86 = arith.constant 0 : index
    %100 = vector.load %arg5[%c0_85, %c0_86] : memref<1x128xf32, #tpu.memory_space<vmem>>, vector<1x128xf32>
    %101 = vector.shape_cast %100 : vector<1x128xf32> to vector<1x1x1x128xf32>
    %102 = vector.broadcast %101 : vector<1x1x1x128xf32> to vector<1x16x16x128xf32>
    %103 = arith.addf %99, %102 : vector<1x16x16x128xf32>
    %cst_87 = arith.constant 0.000000e+00 : f32
    %cst_88 = arith.constant 6.000000e+00 : f32
    %104 = vector.broadcast %cst_87 : f32 to vector<1x16x16x128xf32>
    %105 = arith.maximumf %104, %103 : vector<1x16x16x128xf32>
    %106 = vector.broadcast %cst_88 : f32 to vector<1x16x16x128xf32>
    %107 = arith.minimumf %106, %105 : vector<1x16x16x128xf32>
    %108 = vector.shape_cast %107 : vector<1x16x16x128xf32> to vector<256x128xf32>
    %109 = arith.truncf %108 : vector<256x128xf32> to vector<256x128xbf16>
    %c0_89 = arith.constant 0 : index
    %c0_90 = arith.constant 0 : index
    %110 = vector.load %arg6[%c0_89, %c0_90] : memref<128x4xbf16, #tpu.memory_space<vmem>>, vector<128x4xbf16>
    %cst_91 = arith.constant dense<0.000000e+00> : vector<256x4xf32>
    %111 = tpu.matmul %109, %110, %cst_91 {dimension_numbers = #tpu.dot_dimension_numbers<[1], [0], [0], [1], [0, 0, 1, 1], [], []>} : vector<256x128xbf16>, vector<128x4xbf16>, vector<256x4xf32> -> vector<256x4xf32>
    %c0_92 = arith.constant 0 : index
    %c0_93 = arith.constant 0 : index
    %112 = vector.load %arg7[%c0_92, %c0_93] : memref<1x4xf32, #tpu.memory_space<vmem>>, vector<1x4xf32>
    %113 = vector.broadcast %112 : vector<1x4xf32> to vector<256x4xf32>
    %114 = arith.addf %111, %113 : vector<256x4xf32>
    %115 = vector.shape_cast %114 : vector<256x4xf32> to vector<1x16x16x4xf32>
    %116 = arith.addf %115, %0 : vector<1x16x16x4xf32>
    %c0_94 = arith.constant 0 : index
    %c0_95 = arith.constant 0 : index
    %c0_96 = arith.constant 0 : index
    %c0_97 = arith.constant 0 : index
    %117 = vector.load %arg8[%c0_94, %c0_95, %c0_96, %c0_97] : memref<1x16x16x4xf32, #tpu.memory_space<vmem>>, vector<1x16x16x4xf32>
    tpu.vector_store %arg8[%c0_94, %c0_95, %c0_96, %c0_97], %116 {strides = array<i32>} : memref<1x16x16x4xf32, #tpu.memory_space<vmem>>, vector<1x16x16x4xf32>,
    return
  }
  func.func @transform_0(%arg0: i32) -> (i32, i32, i32, i32) {
    %c0_i32 = arith.constant 0 : i32
    %c0_i32_0 = arith.constant 0 : i32
    %c0_i32_1 = arith.constant 0 : i32
    %c0_i32_2 = arith.constant 0 : i32
    return %arg0, %c0_i32, %c0_i32_0, %c0_i32_1 : i32, i32, i32, i32
  }
  func.func @transform_1(%arg0: i32) -> (i32, i32) {
    %c0_i32 = arith.constant 0 : i32
    %c0_i32_0 = arith.constant 0 : i32
    %c0_i32_1 = arith.constant 0 : i32
    return %c0_i32, %c0_i32_0 : i32, i32
  }
  func.func @transform_2(%arg0: i32) -> (i32, i32) {
    %c0_i32 = arith.constant 0 : i32
    %c0_i32_0 = arith.constant 0 : i32
    %c0_i32_1 = arith.constant 0 : i32
    return %c0_i32, %c0_i32_0 : i32, i32
  }
  func.func @transform_3(%arg0: i32) -> (i32, i32) {
    %c0_i32 = arith.constant 0 : i32
    %c0_i32_0 = arith.constant 0 : i32
    %c0_i32_1 = arith.constant 0 : i32
    return %c0_i32, %c0_i32_0 : i32, i32
  }
  func.func @transform_4(%arg0: i32) -> (i32, i32) {
    %c0_i32 = arith.constant 0 : i32
    %c0_i32_0 = arith.constant 0 : i32
    %c0_i32_1 = arith.constant 0 : i32
    return %c0_i32, %c0_i32_0 : i32, i32
  }
  func.func @transform_5(%arg0: i32) -> (i32, i32) {
    %c0_i32 = arith.constant 0 : i32
    %c0_i32_0 = arith.constant 0 : i32
    %c0_i32_1 = arith.constant 0 : i32
    return %c0_i32, %c0_i32_0 : i32, i32
  }
  func.func @transform_6(%arg0: i32) -> (i32, i32) {
    %c0_i32 = arith.constant 0 : i32
    %c0_i32_0 = arith.constant 0 : i32
    %c0_i32_1 = arith.constant 0 : i32
    return %c0_i32, %c0_i32_0 : i32, i32
  }
  func.func @transform_7(%arg0: i32) -> (i32, i32, i32, i32) {
    %c0_i32 = arith.constant 0 : i32
    %c0_i32_0 = arith.constant 0 : i32
    %c0_i32_1 = arith.constant 0 : i32
    %c0_i32_2 = arith.constant 0 : i32
    return %arg0, %c0_i32, %c0_i32_0, %c0_i32_1 : i32, i32, i32, i32
  }
}

</mosaic_0001>

<llo_original>
// kernel: inverse_residual_block.1
$region0: #{inverse_residual_block.1}
  #allocation0 [shape = 'u32[]', space=smem, size = 0x4, offset = 0x4, fixed_abs, tag = 'smem constant byte address 0x4 - core index']
  #allocation1 [shape = 'u32[144,128]{1,0:T(1,128)}', space=vmem, size = 0x12000, scoped, tag = 'internal scratch']
  #allocation2 [shape = 'f32[1,16,16,128]{3,2,1,0:T(8,128)}', space=vmem, size = 0x20000, scoped, tag = 'scratch operand']
  %s0 = inlined_call_operand.vmem [shape: f32[2,16,16,4], index: 0, kind: input, shape index: {}]
  %s1 = inlined_call_operand.vmem [shape: bf16[4,128], index: 1, kind: input, shape index: {}]
  %s2 = inlined_call_operand.vmem [shape: f32[1,128], index: 2, kind: input, shape index: {}]
  %s3 = inlined_call_operand.vmem [shape: f32[9,128], index: 3, kind: input, shape index: {}]
  %s4 = inlined_call_operand.vmem [shape: f32[1,128], index: 4, kind: input, shape index: {}]
  %s5 = inlined_call_operand.vmem [shape: bf16[128,4], index: 5, kind: input, shape index: {}]
  %s6 = inlined_call_operand.vmem [shape: f32[1,4], index: 6, kind: input, shape index: {}]
  %s7 = inlined_call_operand.vmem [shape: f32[2,16,16,4], index: 7, kind: output, shape index: {}]
  %s8 = sld [smem:[#allocation0]]
  $region61: #{inverse_residual_block.1} parent=0
    _
  %s10 = ssub.s32 1, %s8
  %s11 = scalar_select 0, %s10, %s8
  loop: start=0, step=1, limit=4
  $region2: #{inverse_residual_block.1} parent=0 // loop_pre_header
    _
  $region3: #{inverse_residual_block.1} parent=0 // loop_header
    %s13 = sphi 0, %s17
    %p14 = scmp.ge.s32.totalorder %s13, 4
    %s23 = sphi 0, %s25
    %s26 = sphi 0, %s23
    %s27 = sphi 0, %s26
    %s43 = sphi 0, %s27
    %s47 = sphi 0, %s47
    %s49 = sphi 0, %s47
    %s50 = sphi 0, %s49
    %s64 = sphi 0, %s50
    %s68 = sphi 0, %s68
    %s70 = sphi 0, %s68
    %s71 = sphi 0, %s70
    %s85 = sphi 0, %s71
    %s89 = sphi 0, %s89
    %s91 = sphi 0, %s89
    %s92 = sphi 0, %s91
    %s106 = sphi 0, %s92
    %s110 = sphi 0, %s110
    %s112 = sphi 0, %s110
    %s113 = sphi 0, %s112
    %s127 = sphi 0, %s113
    %s131 = sphi 0, %s131
    %s133 = sphi 0, %s131
    %s134 = sphi 0, %s133
    %s148 = sphi 0, %s134
    %s152 = sphi 0, %s152
    %s154 = sphi 0, %s152
    %s155 = sphi 0, %s154
    %s169 = sphi 0, %s155
    %s175 = sphi 0, %s177
    %s178 = sphi 0, %s175
    %s179 = sphi 0, %s178
    %s195 = sphi 0, %s179
  $region4: #{inverse_residual_block.1} parent=0 // loop_header_branch
    %16 = sbr.rel (%p14) target = $region8
  $region5: #{inverse_residual_block.1} parent=0 // loop_body
    %s18 = ssub.s32 %s13, 1
    %s19 = ssub.s32 %s13, 2
    %s20 = sadd.s32 %s13, 1
    %s21 = ssub.s32 %s13, %s20
    %p22 = scmp.eq.s32.totalorder %s21, 0
    %s24 = sadd.s32 %s23, 1
    %s25 = scalar_select %p22, %s23, %s24
    %p28 = pneg %p22
    %p29 = scmp.eq.s32.totalorder %s13, 1
    %p30 = por %p28, %p29
    %p31 = scmp.ne.s32.totalorder %s23, %s26
    %p32 = scmp.eq.s32.totalorder %s13, 0
    %p33 = por %p31, %p32
    %p34 = scmp.ne.s32.totalorder %s23, %s26
    %p35 = scmp.eq.s32.totalorder %s18, 1
    %p36 = por %p34, %p35
    %p37 = scmp.ne.s32.totalorder %s26, %s27
    %p38 = scmp.eq.s32.totalorder %s18, 0
    %p39 = por %p37, %p38
    %p40 = scmp.ne.s32.totalorder %s26, %s27
    %p41 = scmp.eq.s32.totalorder %s19, 1
    %p42 = por %p40, %p41
    %p44 = scmp.ne.s32.totalorder %s27, %s43
    %p45 = scmp.eq.s32.totalorder %s19, 0
    %p46 = por %p44, %p45
    %s48 = sadd.s32 %s47, 1
    %p51 = scmp.eq.s32.totalorder %s13, 1
    %p52 = scmp.ne.s32.totalorder %s47, %s49
    %p53 = scmp.eq.s32.totalorder %s13, 0
    %p54 = por %p52, %p53
    %p55 = scmp.ne.s32.totalorder %s47, %s49
    %p56 = scmp.eq.s32.totalorder %s18, 1
    %p57 = por %p55, %p56
    %p58 = scmp.ne.s32.totalorder %s49, %s50
    %p59 = scmp.eq.s32.totalorder %s18, 0
    %p60 = por %p58, %p59
    %p61 = scmp.ne.s32.totalorder %s49, %s50
    %p62 = scmp.eq.s32.totalorder %s19, 1
    %p63 = por %p61, %p62
    %p65 = scmp.ne.s32.totalorder %s50, %s64
    %p66 = scmp.eq.s32.totalorder %s19, 0
    %p67 = por %p65, %p66
    %s69 = sadd.s32 %s68, 1
    %p72 = scmp.eq.s32.totalorder %s13, 1
    %p73 = scmp.ne.s32.totalorder %s68, %s70
    %p74 = scmp.eq.s32.totalorder %s13, 0
    %p75 = por %p73, %p74
    %p76 = scmp.ne.s32.totalorder %s68, %s70
    %p77 = scmp.eq.s32.totalorder %s18, 1
    %p78 = por %p76, %p77
    %p79 = scmp.ne.s32.totalorder %s70, %s71
    %p80 = scmp.eq.s32.totalorder %s18, 0
    %p81 = por %p79, %p80
    %p82 = scmp.ne.s32.totalorder %s70, %s71
    %p83 = scmp.eq.s32.totalorder %s19, 1
    %p84 = por %p82, %p83
    %p86 = scmp.ne.s32.totalorder %s71, %s85
    %p87 = scmp.eq.s32.totalorder %s19, 0
    %p88 = por %p86, %p87
    %s90 = sadd.s32 %s89, 1
    %p93 = scmp.eq.s32.totalorder %s13, 1
    %p94 = scmp.ne.s32.totalorder %s89, %s91
    %p95 = scmp.eq.s32.totalorder %s13, 0
    %p96 = por %p94, %p95
    %p97 = scmp.ne.s32.totalorder %s89, %s91
    %p98 = scmp.eq.s32.totalorder %s18, 1
    %p99 = por %p97, %p98
    %p100 = scmp.ne.s32.totalorder %s91, %s92
    %p101 = scmp.eq.s32.totalorder %s18, 0
    %p102 = por %p100, %p101
    %p103 = scmp.ne.s32.totalorder %s91, %s92
    %p104 = scmp.eq.s32.totalorder %s19, 1
    %p105 = por %p103, %p104
    %p107 = scmp.ne.s32.totalorder %s92, %s106
    %p108 = scmp.eq.s32.totalorder %s19, 0
    %p109 = por %p107, %p108
    %s111 = sadd.s32 %s110, 1
    %p114 = scmp.eq.s32.totalorder %s13, 1
    %p115 = scmp.ne.s32.totalorder %s110, %s112
    %p116 = scmp.eq.s32.totalorder %s13, 0
    %p117 = por %p115, %p116
    %p118 = scmp.ne.s32.totalorder %s110, %s112
    %p119 = scmp.eq.s32.totalorder %s18, 1
    %p120 = por %p118, %p119
    %p121 = scmp.ne.s32.totalorder %s112, %s113
    %p122 = scmp.eq.s32.totalorder %s18, 0
    %p123 = por %p121, %p122
    %p124 = scmp.ne.s32.totalorder %s112, %s113
    %p125 = scmp.eq.s32.totalorder %s19, 1
    %p126 = por %p124, %p125
    %p128 = scmp.ne.s32.totalorder %s113, %s127
    %p129 = scmp.eq.s32.totalorder %s19, 0
    %p130 = por %p128, %p129
    %s132 = sadd.s32 %s131, 1
    %p135 = scmp.eq.s32.totalorder %s13, 1
    %p136 = scmp.ne.s32.totalorder %s131, %s133
    %p137 = scmp.eq.s32.totalorder %s13, 0
    %p138 = por %p136, %p137
    %p139 = scmp.ne.s32.totalorder %s131, %s133
    %p140 = scmp.eq.s32.totalorder %s18, 1
    %p141 = por %p139, %p140
    %p142 = scmp.ne.s32.totalorder %s133, %s134
    %p143 = scmp.eq.s32.totalorder %s18, 0
    %p144 = por %p142, %p143
    %p145 = scmp.ne.s32.totalorder %s133, %s134
    %p146 = scmp.eq.s32.totalorder %s19, 1
    %p147 = por %p145, %p146
    %p149 = scmp.ne.s32.totalorder %s134, %s148
    %p150 = scmp.eq.s32.totalorder %s19, 0
    %p151 = por %p149, %p150
    %s153 = sadd.s32 %s152, 1
    %p156 = scmp.eq.s32.totalorder %s13, 1
    %p157 = scmp.ne.s32.totalorder %s152, %s154
    %p158 = scmp.eq.s32.totalorder %s13, 0
    %p159 = por %p157, %p158
    %p160 = scmp.ne.s32.totalorder %s152, %s154
    %p161 = scmp.eq.s32.totalorder %s18, 1
    %p162 = por %p160, %p161
    %p163 = scmp.ne.s32.totalorder %s154, %s155
    %p164 = scmp.eq.s32.totalorder %s18, 0
    %p165 = por %p163, %p164
    %p166 = scmp.ne.s32.totalorder %s154, %s155
    %p167 = scmp.eq.s32.totalorder %s19, 1
    %p168 = por %p166, %p167
    %p170 = scmp.ne.s32.totalorder %s155, %s169
    %p171 = scmp.eq.s32.totalorder %s19, 0
    %p172 = por %p170, %p171
    %s173 = ssub.s32 %s13, %s20
    %p174 = scmp.eq.s32.totalorder %s173, 0
    %s176 = sadd.s32 %s175, 1
    %s177 = scalar_select %p174, %s175, %s176
    %p180 = pneg %p174
    %p181 = scmp.eq.s32.totalorder %s13, 1
    %p182 = por %p180, %p181
    %p183 = scmp.ne.s32.totalorder %s175, %s178
    %p184 = scmp.eq.s32.totalorder %s13, 0
    %p185 = por %p183, %p184
    %p186 = scmp.ne.s32.totalorder %s175, %s178
    %p187 = scmp.eq.s32.totalorder %s18, 1
    %p188 = por %p186, %p187
    %p189 = scmp.ne.s32.totalorder %s178, %s179
    %p190 = scmp.eq.s32.totalorder %s18, 0
    %p191 = por %p189, %p190
    %p192 = scmp.ne.s32.totalorder %s178, %s179
    %p193 = scmp.eq.s32.totalorder %s19, 1
    %p194 = por %p192, %p193
    %p196 = scmp.ne.s32.totalorder %s179, %s195
    %p197 = scmp.eq.s32.totalorder %s19, 0
    %p198 = por %p196, %p197
    %p199 = scmp.le.s32.totalorder 1, %s13
    %p200 = scmp.lt.s32.totalorder %s13, 3
    %p201 = pnand %p199, %p200
    %p202 = pneg %p201
    // Predicated region
    $region9: #{inverse_residual_block.1} parent=5 // pred_check
      _
    $region10: #{inverse_residual_block.1} parent=5 // pred_check_branch
      %204 = sbr.rel (%p201) target = $region12
    $region11: #{inverse_residual_block.1} parent=5 // pred_region
      %s205 = ssub.s32 %s13, 1
      // Predicated region
      $region13: #{inverse_residual_block.1} parent=11 // pred_check
        %p206 = pneg %p60
      $region14: #{inverse_residual_block.1} parent=11 // pred_check_branch
        %208 = sbr.rel (%p206) target = $region16
      $region15: #{inverse_residual_block.1} parent=11 // pred_region
        _
      $region16: #{inverse_residual_block.1} parent=11 // pred_fallthru
        _
      // Predicated region
      $region17: #{inverse_residual_block.1} parent=11 // pred_check
        %p209 = pneg %p81
      $region18: #{inverse_residual_block.1} parent=11 // pred_check_branch
        %211 = sbr.rel (%p209) target = $region20
      $region19: #{inverse_residual_block.1} parent=11 // pred_region
        _
      $region20: #{inverse_residual_block.1} parent=11 // pred_fallthru
        _
      // Predicated region
      $region21: #{inverse_residual_block.1} parent=11 // pred_check
        %p212 = pneg %p102
      $region22: #{inverse_residual_block.1} parent=11 // pred_check_branch
        %214 = sbr.rel (%p212) target = $region24
      $region23: #{inverse_residual_block.1} parent=11 // pred_region
        _
      $region24: #{inverse_residual_block.1} parent=11 // pred_fallthru
        _
      // Predicated region
      $region25: #{inverse_residual_block.1} parent=11 // pred_check
        %p215 = pneg %p123
      $region26: #{inverse_residual_block.1} parent=11 // pred_check_branch
        %217 = sbr.rel (%p215) target = $region28
      $region27: #{inverse_residual_block.1} parent=11 // pred_region
        _
      $region28: #{inverse_residual_block.1} parent=11 // pred_fallthru
        _
      // Predicated region
      $region29: #{inverse_residual_block.1} parent=11 // pred_check
        %p218 = pneg %p144
      $region30: #{inverse_residual_block.1} parent=11 // pred_check_branch
        %220 = sbr.rel (%p218) target = $region32
      $region31: #{inverse_residual_block.1} parent=11 // pred_region
        _
      $region32: #{inverse_residual_block.1} parent=11 // pred_fallthru
        _
      // Predicated region
      $region33: #{inverse_residual_block.1} parent=11 // pred_check
        %p221 = pneg %p165
      $region34: #{inverse_residual_block.1} parent=11 // pred_check_branch
        %223 = sbr.rel (%p221) target = $region36
      $region35: #{inverse_residual_block.1} parent=11 // pred_region
        _
      $region36: #{inverse_residual_block.1} parent=11 // pred_fallthru
        _
    $region12: #{inverse_residual_block.1} parent=5 // pred_fallthru
      _
    %p224 = scmp.lt.s32.totalorder %s13, 2
    // Predicated region
    $region37: #{inverse_residual_block.1} parent=5 // pred_check
      %p225 = pneg %p224
    $region38: #{inverse_residual_block.1} parent=5 // pred_check_branch
      %227 = sbr.rel (%p225) target = $region40
    $region39: #{inverse_residual_block.1} parent=5 // pred_region
      // Predicated region
      $region41: #{inverse_residual_block.1} parent=39 // pred_check
        %p228 = pneg %p33
      $region42: #{inverse_residual_block.1} parent=39 // pred_check_branch
        %230 = sbr.rel (%p228) target = $region44
      $region43: #{inverse_residual_block.1} parent=39 // pred_region
        %p231 = scmp.lt.s32.totalorder %s13, 1
        %s232 = scalar_select %p231, %s13, 1
        %s233 = smul.addr %s232, 32
        %s234 = smul.addr %s233, 8
        %s235 = scalar_lea.vmem %s0, %s234
      $region44: #{inverse_residual_block.1} parent=39 // pred_fallthru
        _
    $region40: #{inverse_residual_block.1} parent=5 // pred_fallthru
      _
    %p236 = scmp.le.s32.totalorder 1, %s13
    %p237 = scmp.lt.s32.totalorder %s13, 3
    %p238 = pnand %p236, %p237
    %p239 = pneg %p238
    // Predicated region
    $region45: #{inverse_residual_block.1} parent=5 // pred_check
      _
    $region46: #{inverse_residual_block.1} parent=5 // pred_check_branch
      %241 = sbr.rel (%p238) target = $region48
    $region47: #{inverse_residual_block.1} parent=5 // pred_region
      %s242 = ssub.s32 %s13, 1
      %p243 = scmp.lt.s32.totalorder %s18, 1
      %s244 = scalar_select %p243, %s18, 1
      %s245 = smul.addr %s244, 32
      %s246 = smul.addr %s245, 8
      %s247 = scalar_lea.vmem %s0, %s246
      %p248 = pneg %p39
      %p249 = pneg %p36
      %p250 = pneg %p60
      %p251 = pneg %p57
      %p252 = pneg %p81
      %p253 = pneg %p78
      %p254 = pneg %p102
      %p255 = pneg %p99
      %p256 = pneg %p123
      %p257 = pneg %p120
      %p258 = pneg %p144
      %p259 = pneg %p141
      %p260 = pneg %p165
      %p261 = pneg %p162
      %p262 = pneg %p191
      %p263 = pneg %p188
      %p264 = scmp.lt.s32.totalorder %s18, 1
      %s265 = scalar_select %p264, %s18, 1
      %s266 = smul.addr %s265, 32
      %s267 = smul.addr %s266, 8
      %s268 = scalar_lea.vmem %s7, %s267
      %p269 = scmp.lt.s32.totalorder %s18, 1
      %s270 = scalar_select %p269, %s18, 1
      %s271 = smul.addr %s270, 32
      %s272 = smul.addr %s271, 8
      %s273 = scalar_lea.vmem %s0, %s272
      %p274 = scmp.lt.s32.totalorder %s18, 1
      %s275 = scalar_select %p274, %s18, 1
      %s276 = smul.addr %s275, 32
      %s277 = smul.addr %s276, 8
      %s278 = scalar_lea.vmem %s7, %s277
      %v280 = vld [vmem:[%s273] sm:$0xff]
      %v281 = vld [vmem:[%s273 + $0x8] sm:$0xff]
      %v282 = vld [vmem:[%s273 + $0x10] sm:$0xff]
      %v283 = vld [vmem:[%s273 + $0x18] sm:$0xff]
      %v284 = vld [vmem:[%s273 + $0x20] sm:$0xff]
      %v285 = vld [vmem:[%s273 + $0x28] sm:$0xff]
      %v286 = vld [vmem:[%s273 + $0x30] sm:$0xff]
      %v287 = vld [vmem:[%s273 + $0x38] sm:$0xff]
      %v288 = vld [vmem:[%s273 + $0x40] sm:$0xff]
      %v289 = vld [vmem:[%s273 + $0x48] sm:$0xff]
      %v290 = vld [vmem:[%s273 + $0x50] sm:$0xff]
      %v291 = vld [vmem:[%s273 + $0x58] sm:$0xff]
      %v292 = vld [vmem:[%s273 + $0x60] sm:$0xff]
      %v293 = vld [vmem:[%s273 + $0x68] sm:$0xff]
      %v294 = vld [vmem:[%s273 + $0x70] sm:$0xff]
      %v295 = vld [vmem:[%s273 + $0x78] sm:$0xff]
      %v296 = vld [vmem:[%s273 + $0x80] sm:$0xff]
      %v297 = vld [vmem:[%s273 + $0x88] sm:$0xff]
      %v298 = vld [vmem:[%s273 + $0x90] sm:$0xff]
      %v299 = vld [vmem:[%s273 + $0x98] sm:$0xff]
      %v300 = vld [vmem:[%s273 + $0xa0] sm:$0xff]
      %v301 = vld [vmem:[%s273 + $0xa8] sm:$0xff]
      %v302 = vld [vmem:[%s273 + $0xb0] sm:$0xff]
      %v303 = vld [vmem:[%s273 + $0xb8] sm:$0xff]
      %v304 = vld [vmem:[%s273 + $0xc0] sm:$0xff]
      %v305 = vld [vmem:[%s273 + $0xc8] sm:$0xff]
      %v306 = vld [vmem:[%s273 + $0xd0] sm:$0xff]
      %v307 = vld [vmem:[%s273 + $0xd8] sm:$0xff]
      %v308 = vld [vmem:[%s273 + $0xe0] sm:$0xff]
      %v309 = vld [vmem:[%s273 + $0xe8] sm:$0xff]
      %v310 = vld [vmem:[%s273 + $0xf0] sm:$0xff]
      %v311 = vld [vmem:[%s273 + $0xf8] sm:$0xff]
      %v312 = vpack.c.bf16 %v281, %v280
      %v313 = vpack.c.bf16 %v283, %v282
      %v314 = vpack.c.bf16 %v285, %v284
      %v315 = vpack.c.bf16 %v287, %v286
      %v316 = vpack.c.bf16 %v289, %v288
      %v317 = vpack.c.bf16 %v291, %v290
      %v318 = vpack.c.bf16 %v293, %v292
      %v319 = vpack.c.bf16 %v295, %v294
      %v320 = vpack.c.bf16 %v297, %v296
      %v321 = vpack.c.bf16 %v299, %v298
      %v322 = vpack.c.bf16 %v301, %v300
      %v323 = vpack.c.bf16 %v303, %v302
      %v324 = vpack.c.bf16 %v305, %v304
      %v325 = vpack.c.bf16 %v307, %v306
      %v326 = vpack.c.bf16 %v309, %v308
      %v327 = vpack.c.bf16 %v311, %v310
      %v328 = vld [vmem:[%s1] sm:$0x3]
      %v329 = vld [vmem:[%s2] sm:$0x1]
      %v331 = vlaneseq
      %v332 = vshrl.u32 %v331, 7
      %v333 = vsub.s32 0, %v332
      %v334 = vrot.slane %v329, %v333
      %vm336 = vcmask 31744
      %v338 = vsel %vm336, %v312, 0
      %v341 = vsel %vm336, %v313, 0
      %v344 = vsel %vm336, %v314, 0
      %v347 = vsel %vm336, %v315, 0
      %v350 = vsel %vm336, %v316, 0
      %v353 = vsel %vm336, %v317, 0
      %v356 = vsel %vm336, %v318, 0
      %v359 = vsel %vm336, %v319, 0
      %v362 = vsel %vm336, %v320, 0
      %v365 = vsel %vm336, %v321, 0
      %v368 = vsel %vm336, %v322, 0
      %v371 = vsel %vm336, %v323, 0
      %v374 = vsel %vm336, %v324, 0
      %v377 = vsel %vm336, %v325, 0
      %v380 = vsel %vm336, %v326, 0
      %v383 = vsel %vm336, %v327, 0
      %vm385 = vcmask 1041408
      %v387 = vsel %vm385, %v328, 0
      %389 = vmatprep.subr.bf16.mxu0 0
      %390 = vmatpush1.bf16.msra.mxu0 %v387
      %391 = vmatprep.subr.bf16.mxu0 0
      %392 = vmatpush1.bf16.msra.mxu0 0
      %393 = vmatprep.subr.bf16.mxu0 0
      %394 = vmatpush1.bf16.msra.mxu0 0
      %395 = vmatprep.subr.bf16.mxu0 0
      %396 = vmatpush1.bf16.msra.mxu0 0
      %397 = vmatprep.subr.bf16.mxu0 0
      %398 = vmatpush1.bf16.msra.mxu0 0
      %399 = vmatprep.subr.bf16.mxu0 0
      %400 = vmatpush1.bf16.msra.mxu0 0
      %401 = vmatprep.subr.bf16.mxu0 0
      %402 = vmatpush1.bf16.msra.mxu0 0
      %403 = vmatprep.subr.bf16.mxu0 0
      %404 = vmatpush1.bf16.msra.mxu0 0
      %405 = vmatprep.subr.bf16.mxu0 0
      %406 = vmatpush1.bf16.msra.mxu0 0
      %407 = vmatprep.subr.bf16.mxu0 0
      %408 = vmatpush1.bf16.msra.mxu0 0
      %409 = vmatprep.subr.bf16.mxu0 0
      %410 = vmatpush1.bf16.msra.mxu0 0
      %411 = vmatprep.subr.bf16.mxu0 0
      %412 = vmatpush1.bf16.msra.mxu0 0
      %413 = vmatprep.subr.bf16.mxu0 0
      %414 = vmatpush1.bf16.msra.mxu0 0
      %415 = vmatprep.subr.bf16.mxu0 0
      %416 = vmatpush1.bf16.msra.mxu0 0
      %417 = vmatprep.subr.bf16.mxu0 0
      %418 = vmatpush1.bf16.msra.mxu0 0
      %419 = vmatprep.subr.bf16.mxu0 0
      %420 = vmatpush1.bf16.msra.mxu0 0
      %421 = vmatprep.mubr.bf16.mxu0 0
      %422 = vmatmul.mubr.bf16.gmra.mrb[0].mxu0 %v338
      %v423 = vpop.f32.mrb[0].mxu0
      %v424 = vadd.f32 %v334, %v423
      %v425 = vpop.f32.mrb[0].mxu0
      %v426 = vpop.f32.mrb[0].mxu0
      %v427 = vadd.f32 %v334, %v426
      %v428 = vpop.f32.mrb[0].mxu0
      %429 = vmatprep.mubr.bf16.mxu0 0
      %430 = vmatmul.mubr.bf16.gmra.mrb[0].mxu0 %v341
      %v431 = vpop.f32.mrb[0].mxu0
      %v432 = vadd.f32 %v334, %v431
      %v433 = vpop.f32.mrb[0].mxu0
      %v434 = vpop.f32.mrb[0].mxu0
      %v435 = vadd.f32 %v334, %v434
      %v436 = vpop.f32.mrb[0].mxu0
      %437 = vmatprep.mubr.bf16.mxu0 0
      %438 = vmatmul.mubr.bf16.gmra.mrb[0].mxu0 %v344
      %v439 = vpop.f32.mrb[0].mxu0
      %v440 = vadd.f32 %v334, %v439
      %v441 = vpop.f32.mrb[0].mxu0
      %v442 = vpop.f32.mrb[0].mxu0
      %v443 = vadd.f32 %v334, %v442
      %v444 = vpop.f32.mrb[0].mxu0
      %445 = vmatprep.mubr.bf16.mxu0 0
      %446 = vmatmul.mubr.bf16.gmra.mrb[0].mxu0 %v347
      %v447 = vpop.f32.mrb[0].mxu0
      %v448 = vadd.f32 %v334, %v447
      %v449 = vpop.f32.mrb[0].mxu0
      %v450 = vpop.f32.mrb[0].mxu0
      %v451 = vadd.f32 %v334, %v450
      %v452 = vpop.f32.mrb[0].mxu0
      %453 = vmatprep.mubr.bf16.mxu0 0
      %454 = vmatmul.mubr.bf16.gmra.mrb[0].mxu0 %v350
      %v455 = vpop.f32.mrb[0].mxu0
      %v456 = vadd.f32 %v334, %v455
      %v457 = vpop.f32.mrb[0].mxu0
      %v458 = vpop.f32.mrb[0].mxu0
      %v459 = vadd.f32 %v334, %v458
      %v460 = vpop.f32.mrb[0].mxu0
      %461 = vmatprep.mubr.bf16.mxu0 0
      %462 = vmatmul.mubr.bf16.gmra.mrb[0].mxu0 %v353
      %v463 = vpop.f32.mrb[0].mxu0
      %v464 = vadd.f32 %v334, %v463
      %v465 = vpop.f32.mrb[0].mxu0
      %v466 = vpop.f32.mrb[0].mxu0
      %v467 = vadd.f32 %v334, %v466
      %v468 = vpop.f32.mrb[0].mxu0
      %469 = vmatprep.mubr.bf16.mxu0 0
      %470 = vmatmul.mubr.bf16.gmra.mrb[0].mxu0 %v356
      %v471 = vpop.f32.mrb[0].mxu0
      %v472 = vadd.f32 %v334, %v471
      %v473 = vpop.f32.mrb[0].mxu0
      %v474 = vpop.f32.mrb[0].mxu0
      %v475 = vadd.f32 %v334, %v474
      %v476 = vpop.f32.mrb[0].mxu0
      %477 = vmatprep.mubr.bf16.mxu0 0
      %478 = vmatmul.mubr.bf16.gmra.mrb[0].mxu0 %v359
      %v479 = vpop.f32.mrb[0].mxu0
      %v480 = vadd.f32 %v334, %v479
      %v481 = vpop.f32.mrb[0].mxu0
      %v482 = vpop.f32.mrb[0].mxu0
      %v483 = vadd.f32 %v334, %v482
      %v484 = vpop.f32.mrb[0].mxu0
      %485 = vmatprep.mubr.bf16.mxu0 0
      %486 = vmatmul.mubr.bf16.gmra.mrb[0].mxu0 %v362
      %v487 = vpop.f32.mrb[0].mxu0
      %v488 = vadd.f32 %v334, %v487
      %v489 = vpop.f32.mrb[0].mxu0
      %v490 = vpop.f32.mrb[0].mxu0
      %v491 = vadd.f32 %v334, %v490
      %v492 = vpop.f32.mrb[0].mxu0
      %493 = vmatprep.mubr.bf16.mxu0 0
      %494 = vmatmul.mubr.bf16.gmra.mrb[0].mxu0 %v365
      %v495 = vpop.f32.mrb[0].mxu0
      %v496 = vadd.f32 %v334, %v495
      %v497 = vpop.f32.mrb[0].mxu0
      %v498 = vpop.f32.mrb[0].mxu0
      %v499 = vadd.f32 %v334, %v498
      %v500 = vpop.f32.mrb[0].mxu0
      %501 = vmatprep.mubr.bf16.mxu0 0
      %502 = vmatmul.mubr.bf16.gmra.mrb[0].mxu0 %v368
      %v503 = vpop.f32.mrb[0].mxu0
      %v504 = vadd.f32 %v334, %v503
      %v505 = vpop.f32.mrb[0].mxu0
      %v506 = vpop.f32.mrb[0].mxu0
      %v507 = vadd.f32 %v334, %v506
      %v508 = vpop.f32.mrb[0].mxu0
      %509 = vmatprep.mubr.bf16.mxu0 0
      %510 = vmatmul.mubr.bf16.gmra.mrb[0].mxu0 %v371
      %v511 = vpop.f32.mrb[0].mxu0
      %v512 = vadd.f32 %v334, %v511
      %v513 = vpop.f32.mrb[0].mxu0
      %v514 = vpop.f32.mrb[0].mxu0
      %v515 = vadd.f32 %v334, %v514
      %v516 = vpop.f32.mrb[0].mxu0
      %517 = vmatprep.mubr.bf16.mxu0 0
      %518 = vmatmul.mubr.bf16.gmra.mrb[0].mxu0 %v374
      %v519 = vpop.f32.mrb[0].mxu0
      %v520 = vadd.f32 %v334, %v519
      %v521 = vpop.f32.mrb[0].mxu0
      %v522 = vpop.f32.mrb[0].mxu0
      %v523 = vadd.f32 %v334, %v522
      %v524 = vpop.f32.mrb[0].mxu0
      %525 = vmatprep.mubr.bf16.mxu0 0
      %526 = vmatmul.mubr.bf16.gmra.mrb[0].mxu0 %v377
      %v527 = vpop.f32.mrb[0].mxu0
      %v528 = vadd.f32 %v334, %v527
      %v529 = vpop.f32.mrb[0].mxu0
      %v530 = vpop.f32.mrb[0].mxu0
      %v531 = vadd.f32 %v334, %v530
      %v532 = vpop.f32.mrb[0].mxu0
      %533 = vmatprep.mubr.bf16.mxu0 0
      %534 = vmatmul.mubr.bf16.gmra.mrb[0].mxu0 %v380
      %v535 = vpop.f32.mrb[0].mxu0
      %v536 = vadd.f32 %v334, %v535
      %v537 = vpop.f32.mrb[0].mxu0
      %v538 = vpop.f32.mrb[0].mxu0
      %v539 = vadd.f32 %v334, %v538
      %v540 = vpop.f32.mrb[0].mxu0
      %541 = vmatprep.mubr.bf16.mxu0 0
      %542 = vmatmul.mubr.bf16.gmra.mrb[0].mxu0 %v383
      %v543 = vpop.f32.mrb[0].mxu0
      %v544 = vadd.f32 %v334, %v543
      %v545 = vpop.f32.mrb[0].mxu0
      %v546 = vpop.f32.mrb[0].mxu0
      %v547 = vadd.f32 %v334, %v546
      %v548 = vpop.f32.mrb[0].mxu0
      %549 = vdwg.mxu0
      %v550 = vmax.f32 %v424, 0.0
      %v551 = vmax.f32 %v427, 0.0
      %v552 = vmax.f32 %v432, 0.0
      %v553 = vmax.f32 %v435, 0.0
      %v554 = vmax.f32 %v440, 0.0
      %v555 = vmax.f32 %v443, 0.0
      %v556 = vmax.f32 %v448, 0.0
      %v557 = vmax.f32 %v451, 0.0
      %v558 = vmax.f32 %v456, 0.0
      %v559 = vmax.f32 %v459, 0.0
      %v560 = vmax.f32 %v464, 0.0
      %v561 = vmax.f32 %v467, 0.0
      %v562 = vmax.f32 %v472, 0.0
      %v563 = vmax.f32 %v475, 0.0
      %v564 = vmax.f32 %v480, 0.0
      %v565 = vmax.f32 %v483, 0.0
      %v566 = vmax.f32 %v488, 0.0
      %v567 = vmax.f32 %v491, 0.0
      %v568 = vmax.f32 %v496, 0.0
      %v569 = vmax.f32 %v499, 0.0
      %v570 = vmax.f32 %v504, 0.0
      %v571 = vmax.f32 %v507, 0.0
      %v572 = vmax.f32 %v512, 0.0
      %v573 = vmax.f32 %v515, 0.0
      %v574 = vmax.f32 %v520, 0.0
      %v575 = vmax.f32 %v523, 0.0
      %v576 = vmax.f32 %v528, 0.0
      %v577 = vmax.f32 %v531, 0.0
      %v578 = vmax.f32 %v536, 0.0
      %v579 = vmax.f32 %v539, 0.0
      %v580 = vmax.f32 %v544, 0.0
      %v581 = vmax.f32 %v547, 0.0
      %v582 = vmin.f32 %v550, 6.0
      %v583 = vmin.f32 %v551, 6.0
      %v584 = vmin.f32 %v552, 6.0
      %v585 = vmin.f32 %v553, 6.0
      %v586 = vmin.f32 %v554, 6.0
      %v587 = vmin.f32 %v555, 6.0
      %v588 = vmin.f32 %v556, 6.0
      %v589 = vmin.f32 %v557, 6.0
      %v590 = vmin.f32 %v558, 6.0
      %v591 = vmin.f32 %v559, 6.0
      %v592 = vmin.f32 %v560, 6.0
      %v593 = vmin.f32 %v561, 6.0
      %v594 = vmin.f32 %v562, 6.0
      %v595 = vmin.f32 %v563, 6.0
      %v596 = vmin.f32 %v564, 6.0
      %v597 = vmin.f32 %v565, 6.0
      %v598 = vmin.f32 %v566, 6.0
      %v599 = vmin.f32 %v567, 6.0
      %v600 = vmin.f32 %v568, 6.0
      %v601 = vmin.f32 %v569, 6.0
      %v602 = vmin.f32 %v570, 6.0
      %v603 = vmin.f32 %v571, 6.0
      %v604 = vmin.f32 %v572, 6.0
      %v605 = vmin.f32 %v573, 6.0
      %v606 = vmin.f32 %v574, 6.0
      %v607 = vmin.f32 %v575, 6.0
      %v608 = vmin.f32 %v576, 6.0
      %v609 = vmin.f32 %v577, 6.0
      %v610 = vmin.f32 %v578, 6.0
      %v611 = vmin.f32 %v579, 6.0
      %v612 = vmin.f32 %v580, 6.0
      %v613 = vmin.f32 %v581, 6.0
      %v614 = vld [vmem:[%s3] sm:$0xff]
      %v615 = vld [vmem:[%s3 + $0x8] sm:$0x1]
      %v616 = vlaneseq
      %v617 = vshrl.u32 %v616, 7
      %v618 = vadd.s32 %v617, 8
      %vm619 = vcmp.ge.s32.totalorder %v617, 1
      %vm620 = vcmp.ge.s32.totalorder %v618, 1
      %vm621 = vcmp.le.s32.totalorder %v617, 14
      %vm622 = vcmp.le.s32.totalorder %v618, 14
      %v623 = vlaneseq
      %v624 = vshrl.u32 %v623, 7
      %v625 = vsub.s32 4, %v624
      %v626 = vrot.slane %v614, %v625
      %v627 = vmul.f32 %v582, %v626
      %v628 = vmul.f32 %v583, %v626
      %v629 = vmul.f32 %v584, %v626
      %v630 = vmul.f32 %v585, %v626
      %v631 = vmul.f32 %v586, %v626
      %v632 = vmul.f32 %v587, %v626
      %v633 = vmul.f32 %v588, %v626
      %v634 = vmul.f32 %v589, %v626
      %v635 = vmul.f32 %v590, %v626
      %v636 = vmul.f32 %v591, %v626
      %v637 = vmul.f32 %v592, %v626
      %v638 = vmul.f32 %v593, %v626
      %v639 = vmul.f32 %v594, %v626
      %v640 = vmul.f32 %v595, %v626
      %v641 = vmul.f32 %v596, %v626
      %v642 = vmul.f32 %v597, %v626
      %v643 = vmul.f32 %v598, %v626
      %v644 = vmul.f32 %v599, %v626
      %v645 = vmul.f32 %v600, %v626
      %v646 = vmul.f32 %v601, %v626
      %v647 = vmul.f32 %v602, %v626
      %v648 = vmul.f32 %v603, %v626
      %v649 = vmul.f32 %v604, %v626
      %v650 = vmul.f32 %v605, %v626
      %v651 = vmul.f32 %v606, %v626
      %v652 = vmul.f32 %v607, %v626
      %v653 = vmul.f32 %v608, %v626
      %v654 = vmul.f32 %v609, %v626
      %v655 = vmul.f32 %v610, %v626
      %v656 = vmul.f32 %v611, %v626
      %v657 = vmul.f32 %v612, %v626
      %v658 = vmul.f32 %v613, %v626
      %659 = vst [vmem:[#allocation2] sm:$0xff] %v627
      %660 = vst [vmem:[#allocation2 + $0x8] sm:$0xff] %v628
      %661 = vst [vmem:[#allocation2 + $0x10] sm:$0xff] %v629
      %662 = vst [vmem:[#allocation2 + $0x18] sm:$0xff] %v630
      %663 = vst [vmem:[#allocation2 + $0x20] sm:$0xff] %v631
      %664 = vst [vmem:[#allocation2 + $0x28] sm:$0xff] %v632
      %665 = vst [vmem:[#allocation2 + $0x30] sm:$0xff] %v633
      %666 = vst [vmem:[#allocation2 + $0x38] sm:$0xff] %v634
      %667 = vst [vmem:[#allocation2 + $0x40] sm:$0xff] %v635
      %668 = vst [vmem:[#allocation2 + $0x48] sm:$0xff] %v636
      %669 = vst [vmem:[#allocation2 + $0x50] sm:$0xff] %v637
      %670 = vst [vmem:[#allocation2 + $0x58] sm:$0xff] %v638
      %671 = vst [vmem:[#allocation2 + $0x60] sm:$0xff] %v639
      %672 = vst [vmem:[#allocation2 + $0x68] sm:$0xff] %v640
      %673 = vst [vmem:[#allocation2 + $0x70] sm:$0xff] %v641
      %674 = vst [vmem:[#allocation2 + $0x78] sm:$0xff] %v642
      %675 = vst [vmem:[#allocation2 + $0x80] sm:$0xff] %v643
      %676 = vst [vmem:[#allocation2 + $0x88] sm:$0xff] %v644
      %677 = vst [vmem:[#allocation2 + $0x90] sm:$0xff] %v645
      %678 = vst [vmem:[#allocation2 + $0x98] sm:$0xff] %v646
      %679 = vst [vmem:[#allocation2 + $0xa0] sm:$0xff] %v647
      %680 = vst [vmem:[#allocation2 + $0xa8] sm:$0xff] %v648
      %681 = vst [vmem:[#allocation2 + $0xb0] sm:$0xff] %v649
      %682 = vst [vmem:[#allocation2 + $0xb8] sm:$0xff] %v650
      %683 = vst [vmem:[#allocation2 + $0xc0] sm:$0xff] %v651
      %684 = vst [vmem:[#allocation2 + $0xc8] sm:$0xff] %v652
      %685 = vst [vmem:[#allocation2 + $0xd0] sm:$0xff] %v653
      %686 = vst [vmem:[#allocation2 + $0xd8] sm:$0xff] %v654
      %687 = vst [vmem:[#allocation2 + $0xe0] sm:$0xff] %v655
      %688 = vst [vmem:[#allocation2 + $0xe8] sm:$0xff] %v656
      %689 = vst [vmem:[#allocation2 + $0xf0] sm:$0xff] %v657
      %690 = vst [vmem:[#allocation2 + $0xf8] sm:$0xff] %v658
      %v691 = vlaneseq
      %v692 = vshrl.u32 %v691, 7
      %v693 = vsub.s32 1, %v692
      %v694 = vrot.slane %v614, %v693
      %v695 = vmul.f32 %v582, %v694
      %v696 = vmul.f32 %v583, %v694
      %v697 = vmul.f32 %v584, %v694
      %v698 = vmul.f32 %v585, %v694
      %v699 = vmul.f32 %v586, %v694
      %v700 = vmul.f32 %v587, %v694
      %v701 = vmul.f32 %v588, %v694
      %v702 = vmul.f32 %v589, %v694
      %v703 = vmul.f32 %v590, %v694
      %v704 = vmul.f32 %v591, %v694
      %v705 = vmul.f32 %v592, %v694
      %v706 = vmul.f32 %v593, %v694
      %v707 = vmul.f32 %v594, %v694
      %v708 = vmul.f32 %v595, %v694
      %v709 = vmul.f32 %v596, %v694
      %v710 = vmul.f32 %v597, %v694
      %v711 = vmul.f32 %v598, %v694
      %v712 = vmul.f32 %v599, %v694
      %v713 = vmul.f32 %v600, %v694
      %v714 = vmul.f32 %v601, %v694
      %v715 = vmul.f32 %v602, %v694
      %v716 = vmul.f32 %v603, %v694
      %v717 = vmul.f32 %v604, %v694
      %v718 = vmul.f32 %v605, %v694
      %v719 = vmul.f32 %v606, %v694
      %v720 = vmul.f32 %v607, %v694
      %v721 = vmul.f32 %v608, %v694
      %v722 = vmul.f32 %v609, %v694
      %v723 = vmul.f32 %v610, %v694
      %v724 = vmul.f32 %v611, %v694
      %s725 = scalar_lea.vmem [#allocation2], 16
      %v726 = vld [vmem:[%s725] sm:$0xff]
      %v727 = vld [vmem:[%s725 + $0x8] sm:$0xff]
      %v728 = vld [vmem:[%s725 + $0x10] sm:$0xff]
      %v729 = vld [vmem:[%s725 + $0x18] sm:$0xff]
      %v730 = vld [vmem:[%s725 + $0x20] sm:$0xff]
      %v731 = vld [vmem:[%s725 + $0x28] sm:$0xff]
      %v732 = vld [vmem:[%s725 + $0x30] sm:$0xff]
      %v733 = vld [vmem:[%s725 + $0x38] sm:$0xff]
      %v734 = vld [vmem:[%s725 + $0x40] sm:$0xff]
      %v735 = vld [vmem:[%s725 + $0x48] sm:$0xff]
      %v736 = vld [vmem:[%s725 + $0x50] sm:$0xff]
      %v737 = vld [vmem:[%s725 + $0x58] sm:$0xff]
      %v738 = vld [vmem:[%s725 + $0x60] sm:$0xff]
      %v739 = vld [vmem:[%s725 + $0x68] sm:$0xff]
      %v740 = vld [vmem:[%s725 + $0x70] sm:$0xff]
      %v741 = vld [vmem:[%s725 + $0x78] sm:$0xff]
      %v742 = vld [vmem:[%s725 + $0x80] sm:$0xff]
      %v743 = vld [vmem:[%s725 + $0x88] sm:$0xff]
      %v744 = vld [vmem:[%s725 + $0x90] sm:$0xff]
      %v745 = vld [vmem:[%s725 + $0x98] sm:$0xff]
      %v746 = vld [vmem:[%s725 + $0xa0] sm:$0xff]
      %v747 = vld [vmem:[%s725 + $0xa8] sm:$0xff]
      %v748 = vld [vmem:[%s725 + $0xb0] sm:$0xff]
      %v749 = vld [vmem:[%s725 + $0xb8] sm:$0xff]
      %v750 = vld [vmem:[%s725 + $0xc0] sm:$0xff]
      %v751 = vld [vmem:[%s725 + $0xc8] sm:$0xff]
      %v752 = vld [vmem:[%s725 + $0xd0] sm:$0xff]
      %v753 = vld [vmem:[%s725 + $0xd8] sm:$0xff]
      %v754 = vld [vmem:[%s725 + $0xe0] sm:$0xff]
      %v755 = vld [vmem:[%s725 + $0xe8] sm:$0xff]
      %v756 = vadd.f32 %v726, %v695
      %v757 = vadd.f32 %v727, %v696
      %v758 = vadd.f32 %v728, %v697
      %v759 = vadd.f32 %v729, %v698
      %v760 = vadd.f32 %v730, %v699
      %v761 = vadd.f32 %v731, %v700
      %v762 = vadd.f32 %v732, %v701
      %v763 = vadd.f32 %v733, %v702
      %v764 = vadd.f32 %v734, %v703
      %v765 = vadd.f32 %v735, %v704
      %v766 = vadd.f32 %v736, %v705
      %v767 = vadd.f32 %v737, %v706
      %v768 = vadd.f32 %v738, %v707
      %v769 = vadd.f32 %v739, %v708
      %v770 = vadd.f32 %v740, %v709
      %v771 = vadd.f32 %v741, %v710
      %v772 = vadd.f32 %v742, %v711
      %v773 = vadd.f32 %v743, %v712
      %v774 = vadd.f32 %v744, %v713
      %v775 = vadd.f32 %v745, %v714
      %v776 = vadd.f32 %v746, %v715
      %v777 = vadd.f32 %v747, %v716
      %v778 = vadd.f32 %v748, %v717
      %v779 = vadd.f32 %v749, %v718
      %v780 = vadd.f32 %v750, %v719
      %v781 = vadd.f32 %v751, %v720
      %v782 = vadd.f32 %v752, %v721
      %v783 = vadd.f32 %v753, %v722
      %v784 = vadd.f32 %v754, %v723
      %v785 = vadd.f32 %v755, %v724
      %786 = vst [vmem:[%s725] sm:$0xff] %v756
      %787 = vst [vmem:[%s725 + $0x8] sm:$0xff] %v757
      %788 = vst [vmem:[%s725 + $0x10] sm:$0xff] %v758
      %789 = vst [vmem:[%s725 + $0x18] sm:$0xff] %v759
      %790 = vst [vmem:[%s725 + $0x20] sm:$0xff] %v760
      %791 = vst [vmem:[%s725 + $0x28] sm:$0xff] %v761
      %792 = vst [vmem:[%s725 + $0x30] sm:$0xff] %v762
      %793 = vst [vmem:[%s725 + $0x38] sm:$0xff] %v763
      %794 = vst [vmem:[%s725 + $0x40] sm:$0xff] %v764
      %795 = vst [vmem:[%s725 + $0x48] sm:$0xff] %v765
      %796 = vst [vmem:[%s725 + $0x50] sm:$0xff] %v766
      %797 = vst [vmem:[%s725 + $0x58] sm:$0xff] %v767
      %798 = vst [vmem:[%s725 + $0x60] sm:$0xff] %v768
      %799 = vst [vmem:[%s725 + $0x68] sm:$0xff] %v769
      %800 = vst [vmem:[%s725 + $0x70] sm:$0xff] %v770
      %801 = vst [vmem:[%s725 + $0x78] sm:$0xff] %v771
      %802 = vst [vmem:[%s725 + $0x80] sm:$0xff] %v772
      %803 = vst [vmem:[%s725 + $0x88] sm:$0xff] %v773
      %804 = vst [vmem:[%s725 + $0x90] sm:$0xff] %v774
      %805 = vst [vmem:[%s725 + $0x98] sm:$0xff] %v775
      %806 = vst [vmem:[%s725 + $0xa0] sm:$0xff] %v776
      %807 = vst [vmem:[%s725 + $0xa8] sm:$0xff] %v777
      %808 = vst [vmem:[%s725 + $0xb0] sm:$0xff] %v778
      %809 = vst [vmem:[%s725 + $0xb8] sm:$0xff] %v779
      %810 = vst [vmem:[%s725 + $0xc0] sm:$0xff] %v780
      %811 = vst [vmem:[%s725 + $0xc8] sm:$0xff] %v781
      %812 = vst [vmem:[%s725 + $0xd0] sm:$0xff] %v782
      %813 = vst [vmem:[%s725 + $0xd8] sm:$0xff] %v783
      %814 = vst [vmem:[%s725 + $0xe0] sm:$0xff] %v784
      %815 = vst [vmem:[%s725 + $0xe8] sm:$0xff] %v785
      %v816 = vlaneseq
      %v817 = vshrl.u32 %v816, 7
      %v818 = vsub.s32 7, %v817
      %v819 = vrot.slane %v614, %v818
      %v820 = vmul.f32 %v584, %v819
      %v821 = vmul.f32 %v585, %v819
      %v822 = vmul.f32 %v586, %v819
      %v823 = vmul.f32 %v587, %v819
      %v824 = vmul.f32 %v588, %v819
      %v825 = vmul.f32 %v589, %v819
      %v826 = vmul.f32 %v590, %v819
      %v827 = vmul.f32 %v591, %v819
      %v828 = vmul.f32 %v592, %v819
      %v829 = vmul.f32 %v593, %v819
      %v830 = vmul.f32 %v594, %v819
      %v831 = vmul.f32 %v595, %v819
      %v832 = vmul.f32 %v596, %v819
      %v833 = vmul.f32 %v597, %v819
      %v834 = vmul.f32 %v598, %v819
      %v835 = vmul.f32 %v599, %v819
      %v836 = vmul.f32 %v600, %v819
      %v837 = vmul.f32 %v601, %v819
      %v838 = vmul.f32 %v602, %v819
      %v839 = vmul.f32 %v603, %v819
      %v840 = vmul.f32 %v604, %v819
      %v841 = vmul.f32 %v605, %v819
      %v842 = vmul.f32 %v606, %v819
      %v843 = vmul.f32 %v607, %v819
      %v844 = vmul.f32 %v608, %v819
      %v845 = vmul.f32 %v609, %v819
      %v846 = vmul.f32 %v610, %v819
      %v847 = vmul.f32 %v611, %v819
      %v848 = vmul.f32 %v612, %v819
      %v849 = vmul.f32 %v613, %v819
      %v850 = vld [vmem:[#allocation2] sm:$0xff]
      %v851 = vld [vmem:[#allocation2 + $0x8] sm:$0xff]
      %v852 = vld [vmem:[#allocation2 + $0x10] sm:$0xff]
      %v853 = vld [vmem:[#allocation2 + $0x18] sm:$0xff]
      %v854 = vld [vmem:[#allocation2 + $0x20] sm:$0xff]
      %v855 = vld [vmem:[#allocation2 + $0x28] sm:$0xff]
      %v856 = vld [vmem:[#allocation2 + $0x30] sm:$0xff]
      %v857 = vld [vmem:[#allocation2 + $0x38] sm:$0xff]
      %v858 = vld [vmem:[#allocation2 + $0x40] sm:$0xff]
      %v859 = vld [vmem:[#allocation2 + $0x48] sm:$0xff]
      %v860 = vld [vmem:[#allocation2 + $0x50] sm:$0xff]
      %v861 = vld [vmem:[#allocation2 + $0x58] sm:$0xff]
      %v862 = vld [vmem:[#allocation2 + $0x60] sm:$0xff]
      %v863 = vld [vmem:[#allocation2 + $0x68] sm:$0xff]
      %v864 = vld [vmem:[#allocation2 + $0x70] sm:$0xff]
      %v865 = vld [vmem:[#allocation2 + $0x78] sm:$0xff]
      %v866 = vld [vmem:[#allocation2 + $0x80] sm:$0xff]
      %v867 = vld [vmem:[#allocation2 + $0x88] sm:$0xff]
      %v868 = vld [vmem:[#allocation2 + $0x90] sm:$0xff]
      %v869 = vld [vmem:[#allocation2 + $0x98] sm:$0xff]
      %v870 = vld [vmem:[#allocation2 + $0xa0] sm:$0xff]
      %v871 = vld [vmem:[#allocation2 + $0xa8] sm:$0xff]
      %v872 = vld [vmem:[#allocation2 + $0xb0] sm:$0xff]
      %v873 = vld [vmem:[#allocation2 + $0xb8] sm:$0xff]
      %v874 = vld [vmem:[#allocation2 + $0xc0] sm:$0xff]
      %v875 = vld [vmem:[#allocation2 + $0xc8] sm:$0xff]
      %v876 = vld [vmem:[#allocation2 + $0xd0] sm:$0xff]
      %v877 = vld [vmem:[#allocation2 + $0xd8] sm:$0xff]
      %v878 = vld [vmem:[#allocation2 + $0xe0] sm:$0xff]
      %v879 = vld [vmem:[#allocation2 + $0xe8] sm:$0xff]
      %v880 = vadd.f32 %v850, %v820
      %v881 = vadd.f32 %v851, %v821
      %v882 = vadd.f32 %v852, %v822
      %v883 = vadd.f32 %v853, %v823
      %v884 = vadd.f32 %v854, %v824
      %v885 = vadd.f32 %v855, %v825
      %v886 = vadd.f32 %v856, %v826
      %v887 = vadd.f32 %v857, %v827
      %v888 = vadd.f32 %v858, %v828
      %v889 = vadd.f32 %v859, %v829
      %v890 = vadd.f32 %v860, %v830
      %v891 = vadd.f32 %v861, %v831
      %v892 = vadd.f32 %v862, %v832
      %v893 = vadd.f32 %v863, %v833
      %v894 = vadd.f32 %v864, %v834
      %v895 = vadd.f32 %v865, %v835
      %v896 = vadd.f32 %v866, %v836
      %v897 = vadd.f32 %v867, %v837
      %v898 = vadd.f32 %v868, %v838
      %v899 = vadd.f32 %v869, %v839
      %v900 = vadd.f32 %v870, %v840
      %v901 = vadd.f32 %v871, %v841
      %v902 = vadd.f32 %v872, %v842
      %v903 = vadd.f32 %v873, %v843
      %v904 = vadd.f32 %v874, %v844
      %v905 = vadd.f32 %v875, %v845
      %v906 = vadd.f32 %v876, %v846
      %v907 = vadd.f32 %v877, %v847
      %v908 = vadd.f32 %v878, %v848
      %v909 = vadd.f32 %v879, %v849
      %910 = vst [vmem:[#allocation2] sm:$0xff] %v880
      %911 = vst [vmem:[#allocation2 + $0x8] sm:$0xff] %v881
      %912 = vst [vmem:[#allocation2 + $0x10] sm:$0xff] %v882
      %913 = vst [vmem:[#allocation2 + $0x18] sm:$0xff] %v883
      %914 = vst [vmem:[#allocation2 + $0x20] sm:$0xff] %v884
      %915 = vst [vmem:[#allocation2 + $0x28] sm:$0xff] %v885
      %916 = vst [vmem:[#allocation2 + $0x30] sm:$0xff] %v886
      %917 = vst [vmem:[#allocation2 + $0x38] sm:$0xff] %v887
      %918 = vst [vmem:[#allocation2 + $0x40] sm:$0xff] %v888
      %919 = vst [vmem:[#allocation2 + $0x48] sm:$0xff] %v889
      %920 = vst [vmem:[#allocation2 + $0x50] sm:$0xff] %v890
      %921 = vst [vmem:[#allocation2 + $0x58] sm:$0xff] %v891
      %922 = vst [vmem:[#allocation2 + $0x60] sm:$0xff] %v892
      %923 = vst [vmem:[#allocation2 + $0x68] sm:$0xff] %v893
      %924 = vst [vmem:[#allocation2 + $0x70] sm:$0xff] %v894
      %925 = vst [vmem:[#allocation2 + $0x78] sm:$0xff] %v895
      %926 = vst [vmem:[#allocation2 + $0x80] sm:$0xff] %v896
      %927 = vst [vmem:[#allocation2 + $0x88] sm:$0xff] %v897
      %928 = vst [vmem:[#allocation2 + $0x90] sm:$0xff] %v898
      %929 = vst [vmem:[#allocation2 + $0x98] sm:$0xff] %v899
      %930 = vst [vmem:[#allocation2 + $0xa0] sm:$0xff] %v900
      %931 = vst [vmem:[#allocation2 + $0xa8] sm:$0xff] %v901
      %932 = vst [vmem:[#allocation2 + $0xb0] sm:$0xff] %v902
      %933 = vst [vmem:[#allocation2 + $0xb8] sm:$0xff] %v903
      %934 = vst [vmem:[#allocation2 + $0xc0] sm:$0xff] %v904
      %935 = vst [vmem:[#allocation2 + $0xc8] sm:$0xff] %v905
      %936 = vst [vmem:[#allocation2 + $0xd0] sm:$0xff] %v906
      %937 = vst [vmem:[#allocation2 + $0xd8] sm:$0xff] %v907
      %938 = vst [vmem:[#allocation2 + $0xe0] sm:$0xff] %v908
      %939 = vst [vmem:[#allocation2 + $0xe8] sm:$0xff] %v909
      %v940 = vrot.slane %v582, 7
      %v941 = vrot.slane %v584, 7
      %v942 = vrot.slane %v586, 7
      %v943 = vrot.slane %v588, 7
      %v944 = vrot.slane %v590, 7
      %v945 = vrot.slane %v592, 7
      %v946 = vrot.slane %v594, 7
      %v947 = vrot.slane %v596, 7
      %v948 = vrot.slane %v598, 7
      %v949 = vrot.slane %v600, 7
      %v950 = vrot.slane %v602, 7
      %v951 = vrot.slane %v604, 7
      %v952 = vrot.slane %v606, 7
      %v953 = vrot.slane %v608, 7
      %v954 = vrot.slane %v610, 7
      %v955 = vrot.slane %v612, 7
      %v956 = vrot.slane %v583, 7
      %v957 = vrot.slane %v585, 7
      %v958 = vrot.slane %v587, 7
      %v959 = vrot.slane %v589, 7
      %v960 = vrot.slane %v591, 7
      %v961 = vrot.slane %v593, 7
      %v962 = vrot.slane %v595, 7
      %v963 = vrot.slane %v597, 7
      %v964 = vrot.slane %v599, 7
      %v965 = vrot.slane %v601, 7
      %v966 = vrot.slane %v603, 7
      %v967 = vrot.slane %v605, 7
      %v968 = vrot.slane %v607, 7
      %v969 = vrot.slane %v609, 7
      %v970 = vrot.slane %v611, 7
      %v971 = vrot.slane %v613, 7
      %vm972 = vcmp.lt.s32.totalorder %v617, 1
      %v973 = vsel %vm972, %v940, %v956
      %v974 = vsel %vm972, %v941, %v957
      %v975 = vsel %vm972, %v942, %v958
      %v976 = vsel %vm972, %v943, %v959
      %v977 = vsel %vm972, %v944, %v960
      %v978 = vsel %vm972, %v945, %v961
      %v979 = vsel %vm972, %v946, %v962
      %v980 = vsel %vm972, %v947, %v963
      %v981 = vsel %vm972, %v948, %v964
      %v982 = vsel %vm972, %v949, %v965
      %v983 = vsel %vm972, %v950, %v966
      %v984 = vsel %vm972, %v951, %v967
      %v985 = vsel %vm972, %v952, %v968
      %v986 = vsel %vm972, %v953, %v969
      %v987 = vsel %vm972, %v954, %v970
      %v988 = vsel %vm972, %v955, %v971
      %v989 = vsel %vm972, %v956, %v940
      %v990 = vsel %vm972, %v957, %v941
      %v991 = vsel %vm972, %v958, %v942
      %v992 = vsel %vm972, %v959, %v943
      %v993 = vsel %vm972, %v960, %v944
      %v994 = vsel %vm972, %v961, %v945
      %v995 = vsel %vm972, %v962, %v946
      %v996 = vsel %vm972, %v963, %v947
      %v997 = vsel %vm972, %v964, %v948
      %v998 = vsel %vm972, %v965, %v949
      %v999 = vsel %vm972, %v966, %v950
      %v1000 = vsel %vm972, %v967, %v951
      %v1001 = vsel %vm972, %v968, %v952
      %v1002 = vsel %vm972, %v969, %v953
      %v1003 = vsel %vm972, %v970, %v954
      %v1004 = vsel %vm972, %v971, %v955
      %v1005 = vsel %vm619, 1, 0
      %v1006 = vsel %vm620, 1, 0
      %vm1007 = vcmp.eq.s32.totalorder %v1005, 1
      %vm1008 = vcmp.eq.s32.totalorder %v1006, 1
      %v1009 = vsel %vm1007, %v989, 0.0
      %v1010 = vsel %vm1008, %v973, 0.0
      %v1011 = vsel %vm1007, %v990, 0.0
      %v1012 = vsel %vm1008, %v974, 0.0
      %v1013 = vsel %vm1007, %v991, 0.0
      %v1014 = vsel %vm1008, %v975, 0.0
      %v1015 = vsel %vm1007, %v992, 0.0
      %v1016 = vsel %vm1008, %v976, 0.0
      %v1017 = vsel %vm1007, %v993, 0.0
      %v1018 = vsel %vm1008, %v977, 0.0
      %v1019 = vsel %vm1007, %v994, 0.0
      %v1020 = vsel %vm1008, %v978, 0.0
      %v1021 = vsel %vm1007, %v995, 0.0
      %v1022 = vsel %vm1008, %v979, 0.0
      %v1023 = vsel %vm1007, %v996, 0.0
      %v1024 = vsel %vm1008, %v980, 0.0
      %v1025 = vsel %vm1007, %v997, 0.0
      %v1026 = vsel %vm1008, %v981, 0.0
      %v1027 = vsel %vm1007, %v998, 0.0
      %v1028 = vsel %vm1008, %v982, 0.0
      %v1029 = vsel %vm1007, %v999, 0.0
      %v1030 = vsel %vm1008, %v983, 0.0
      %v1031 = vsel %vm1007, %v1000, 0.0
      %v1032 = vsel %vm1008, %v984, 0.0
      %v1033 = vsel %vm1007, %v1001, 0.0
      %v1034 = vsel %vm1008, %v985, 0.0
      %v1035 = vsel %vm1007, %v1002, 0.0
      %v1036 = vsel %vm1008, %v986, 0.0
      %v1037 = vsel %vm1007, %v1003, 0.0
      %v1038 = vsel %vm1008, %v987, 0.0
      %v1039 = vsel %vm1007, %v1004, 0.0
      %v1040 = vsel %vm1008, %v988, 0.0
      %v1041 = vlaneseq
      %v1042 = vshrl.u32 %v1041, 7
      %v1043 = vsub.s32 3, %v1042
      %v1044 = vrot.slane %v614, %v1043
      %v1045 = vmul.f32 %v1009, %v1044
      %v1046 = vmul.f32 %v1010, %v1044
      %v1047 = vmul.f32 %v1011, %v1044
      %v1048 = vmul.f32 %v1012, %v1044
      %v1049 = vmul.f32 %v1013, %v1044
      %v1050 = vmul.f32 %v1014, %v1044
      %v1051 = vmul.f32 %v1015, %v1044
      %v1052 = vmul.f32 %v1016, %v1044
      %v1053 = vmul.f32 %v1017, %v1044
      %v1054 = vmul.f32 %v1018, %v1044
      %v1055 = vmul.f32 %v1019, %v1044
      %v1056 = vmul.f32 %v1020, %v1044
      %v1057 = vmul.f32 %v1021, %v1044
      %v1058 = vmul.f32 %v1022, %v1044
      %v1059 = vmul.f32 %v1023, %v1044
      %v1060 = vmul.f32 %v1024, %v1044
      %v1061 = vmul.f32 %v1025, %v1044
      %v1062 = vmul.f32 %v1026, %v1044
      %v1063 = vmul.f32 %v1027, %v1044
      %v1064 = vmul.f32 %v1028, %v1044
      %v1065 = vmul.f32 %v1029, %v1044
      %v1066 = vmul.f32 %v1030, %v1044
      %v1067 = vmul.f32 %v1031, %v1044
      %v1068 = vmul.f32 %v1032, %v1044
      %v1069 = vmul.f32 %v1033, %v1044
      %v1070 = vmul.f32 %v1034, %v1044
      %v1071 = vmul.f32 %v1035, %v1044
      %v1072 = vmul.f32 %v1036, %v1044
      %v1073 = vmul.f32 %v1037, %v1044
      %v1074 = vmul.f32 %v1038, %v1044
      %v1075 = vmul.f32 %v1039, %v1044
      %v1076 = vmul.f32 %v1040, %v1044
      %v1077 = vld [vmem:[#allocation2] sm:$0xff]
      %v1078 = vld [vmem:[#allocation2 + $0x8] sm:$0xff]
      %v1079 = vld [vmem:[#allocation2 + $0x10] sm:$0xff]
      %v1080 = vld [vmem:[#allocation2 + $0x18] sm:$0xff]
      %v1081 = vld [vmem:[#allocation2 + $0x20] sm:$0xff]
      %v1082 = vld [vmem:[#allocation2 + $0x28] sm:$0xff]
      %v1083 = vld [vmem:[#allocation2 + $0x30] sm:$0xff]
      %v1084 = vld [vmem:[#allocation2 + $0x38] sm:$0xff]
      %v1085 = vld [vmem:[#allocation2 + $0x40] sm:$0xff]
      %v1086 = vld [vmem:[#allocation2 + $0x48] sm:$0xff]
      %v1087 = vld [vmem:[#allocation2 + $0x50] sm:$0xff]
      %v1088 = vld [vmem:[#allocation2 + $0x58] sm:$0xff]
      %v1089 = vld [vmem:[#allocation2 + $0x60] sm:$0xff]
      %v1090 = vld [vmem:[#allocation2 + $0x68] sm:$0xff]
      %v1091 = vld [vmem:[#allocation2 + $0x70] sm:$0xff]
      %v1092 = vld [vmem:[#allocation2 + $0x78] sm:$0xff]
      %v1093 = vld [vmem:[#allocation2 + $0x80] sm:$0xff]
      %v1094 = vld [vmem:[#allocation2 + $0x88] sm:$0xff]
      %v1095 = vld [vmem:[#allocation2 + $0x90] sm:$0xff]
      %v1096 = vld [vmem:[#allocation2 + $0x98] sm:$0xff]
      %v1097 = vld [vmem:[#allocation2 + $0xa0] sm:$0xff]
      %v1098 = vld [vmem:[#allocation2 + $0xa8] sm:$0xff]
      %v1099 = vld [vmem:[#allocation2 + $0xb0] sm:$0xff]
      %v1100 = vld [vmem:[#allocation2 + $0xb8] sm:$0xff]
      %v1101 = vld [vmem:[#allocation2 + $0xc0] sm:$0xff]
      %v1102 = vld [vmem:[#allocation2 + $0xc8] sm:$0xff]
      %v1103 = vld [vmem:[#allocation2 + $0xd0] sm:$0xff]
      %v1104 = vld [vmem:[#allocation2 + $0xd8] sm:$0xff]
      %v1105 = vld [vmem:[#allocation2 + $0xe0] sm:$0xff]
      %v1106 = vld [vmem:[#allocation2 + $0xe8] sm:$0xff]
      %v1107 = vld [vmem:[#allocation2 + $0xf0] sm:$0xff]
      %v1108 = vld [vmem:[#allocation2 + $0xf8] sm:$0xff]
      %v1109 = vadd.f32 %v1077, %v1045
      %v1110 = vadd.f32 %v1078, %v1046
      %v1111 = vadd.f32 %v1079, %v1047
      %v1112 = vadd.f32 %v1080, %v1048
      %v1113 = vadd.f32 %v1081, %v1049
      %v1114 = vadd.f32 %v1082, %v1050
      %v1115 = vadd.f32 %v1083, %v1051
      %v1116 = vadd.f32 %v1084, %v1052
      %v1117 = vadd.f32 %v1085, %v1053
      %v1118 = vadd.f32 %v1086, %v1054
      %v1119 = vadd.f32 %v1087, %v1055
      %v1120 = vadd.f32 %v1088, %v1056
      %v1121 = vadd.f32 %v1089, %v1057
      %v1122 = vadd.f32 %v1090, %v1058
      %v1123 = vadd.f32 %v1091, %v1059
      %v1124 = vadd.f32 %v1092, %v1060
      %v1125 = vadd.f32 %v1093, %v1061
      %v1126 = vadd.f32 %v1094, %v1062
      %v1127 = vadd.f32 %v1095, %v1063
      %v1128 = vadd.f32 %v1096, %v1064
      %v1129 = vadd.f32 %v1097, %v1065
      %v1130 = vadd.f32 %v1098, %v1066
      %v1131 = vadd.f32 %v1099, %v1067
      %v1132 = vadd.f32 %v1100, %v1068
      %v1133 = vadd.f32 %v1101, %v1069
      %v1134 = vadd.f32 %v1102, %v1070
      %v1135 = vadd.f32 %v1103, %v1071
      %v1136 = vadd.f32 %v1104, %v1072
      %v1137 = vadd.f32 %v1105, %v1073
      %v1138 = vadd.f32 %v1106, %v1074
      %v1139 = vadd.f32 %v1107, %v1075
      %v1140 = vadd.f32 %v1108, %v1076
      %1141 = vst [vmem:[#allocation2] sm:$0xff] %v1109
      %1142 = vst [vmem:[#allocation2 + $0x8] sm:$0xff] %v1110
      %1143 = vst [vmem:[#allocation2 + $0x10] sm:$0xff] %v1111
      %1144 = vst [vmem:[#allocation2 + $0x18] sm:$0xff] %v1112
      %1145 = vst [vmem:[#allocation2 + $0x20] sm:$0xff] %v1113
      %1146 = vst [vmem:[#allocation2 + $0x28] sm:$0xff] %v1114
      %1147 = vst [vmem:[#allocation2 + $0x30] sm:$0xff] %v1115
      %1148 = vst [vmem:[#allocation2 + $0x38] sm:$0xff] %v1116
      %1149 = vst [vmem:[#allocation2 + $0x40] sm:$0xff] %v1117
      %1150 = vst [vmem:[#allocation2 + $0x48] sm:$0xff] %v1118
      %1151 = vst [vmem:[#allocation2 + $0x50] sm:$0xff] %v1119
      %1152 = vst [vmem:[#allocation2 + $0x58] sm:$0xff] %v1120
      %1153 = vst [vmem:[#allocation2 + $0x60] sm:$0xff] %v1121
      %1154 = vst [vmem:[#allocation2 + $0x68] sm:$0xff] %v1122
      %1155 = vst [vmem:[#allocation2 + $0x70] sm:$0xff] %v1123
      %1156 = vst [vmem:[#allocation2 + $0x78] sm:$0xff] %v1124
      %1157 = vst [vmem:[#allocation2 + $0x80] sm:$0xff] %v1125
      %1158 = vst [vmem:[#allocation2 + $0x88] sm:$0xff] %v1126
      %1159 = vst [vmem:[#allocation2 + $0x90] sm:$0xff] %v1127
      %1160 = vst [vmem:[#allocation2 + $0x98] sm:$0xff] %v1128
      %1161 = vst [vmem:[#allocation2 + $0xa0] sm:$0xff] %v1129
      %1162 = vst [vmem:[#allocation2 + $0xa8] sm:$0xff] %v1130
      %1163 = vst [vmem:[#allocation2 + $0xb0] sm:$0xff] %v1131
      %1164 = vst [vmem:[#allocation2 + $0xb8] sm:$0xff] %v1132
      %1165 = vst [vmem:[#allocation2 + $0xc0] sm:$0xff] %v1133
      %1166 = vst [vmem:[#allocation2 + $0xc8] sm:$0xff] %v1134
      %1167 = vst [vmem:[#allocation2 + $0xd0] sm:$0xff] %v1135
      %1168 = vst [vmem:[#allocation2 + $0xd8] sm:$0xff] %v1136
      %1169 = vst [vmem:[#allocation2 + $0xe0] sm:$0xff] %v1137
      %1170 = vst [vmem:[#allocation2 + $0xe8] sm:$0xff] %v1138
      %1171 = vst [vmem:[#allocation2 + $0xf0] sm:$0xff] %v1139
      %1172 = vst [vmem:[#allocation2 + $0xf8] sm:$0xff] %v1140
      %v1173 = vlaneseq
      %v1174 = vshrl.u32 %v1173, 7
      %v1175 = vsub.s32 0, %v1174
      %v1176 = vrot.slane %v614, %v1175
      %v1177 = vmul.f32 %v1009, %v1176
      %v1178 = vmul.f32 %v1010, %v1176
      %v1179 = vmul.f32 %v1011, %v1176
      %v1180 = vmul.f32 %v1012, %v1176
      %v1181 = vmul.f32 %v1013, %v1176
      %v1182 = vmul.f32 %v1014, %v1176
      %v1183 = vmul.f32 %v1015, %v1176
      %v1184 = vmul.f32 %v1016, %v1176
      %v1185 = vmul.f32 %v1017, %v1176
      %v1186 = vmul.f32 %v1018, %v1176
      %v1187 = vmul.f32 %v1019, %v1176
      %v1188 = vmul.f32 %v1020, %v1176
      %v1189 = vmul.f32 %v1021, %v1176
      %v1190 = vmul.f32 %v1022, %v1176
      %v1191 = vmul.f32 %v1023, %v1176
      %v1192 = vmul.f32 %v1024, %v1176
      %v1193 = vmul.f32 %v1025, %v1176
      %v1194 = vmul.f32 %v1026, %v1176
      %v1195 = vmul.f32 %v1027, %v1176
      %v1196 = vmul.f32 %v1028, %v1176
      %v1197 = vmul.f32 %v1029, %v1176
      %v1198 = vmul.f32 %v1030, %v1176
      %v1199 = vmul.f32 %v1031, %v1176
      %v1200 = vmul.f32 %v1032, %v1176
      %v1201 = vmul.f32 %v1033, %v1176
      %v1202 = vmul.f32 %v1034, %v1176
      %v1203 = vmul.f32 %v1035, %v1176
      %v1204 = vmul.f32 %v1036, %v1176
      %v1205 = vmul.f32 %v1037, %v1176
      %v1206 = vmul.f32 %v1038, %v1176
      %v1207 = vld [vmem:[%s725] sm:$0xff]
      %v1208 = vld [vmem:[%s725 + $0x8] sm:$0xff]
      %v1209 = vld [vmem:[%s725 + $0x10] sm:$0xff]
      %v1210 = vld [vmem:[%s725 + $0x18] sm:$0xff]
      %v1211 = vld [vmem:[%s725 + $0x20] sm:$0xff]
      %v1212 = vld [vmem:[%s725 + $0x28] sm:$0xff]
      %v1213 = vld [vmem:[%s725 + $0x30] sm:$0xff]
      %v1214 = vld [vmem:[%s725 + $0x38] sm:$0xff]
      %v1215 = vld [vmem:[%s725 + $0x40] sm:$0xff]
      %v1216 = vld [vmem:[%s725 + $0x48] sm:$0xff]
      %v1217 = vld [vmem:[%s725 + $0x50] sm:$0xff]
      %v1218 = vld [vmem:[%s725 + $0x58] sm:$0xff]
      %v1219 = vld [vmem:[%s725 + $0x60] sm:$0xff]
      %v1220 = vld [vmem:[%s725 + $0x68] sm:$0xff]
      %v1221 = vld [vmem:[%s725 + $0x70] sm:$0xff]
      %v1222 = vld [vmem:[%s725 + $0x78] sm:$0xff]
      %v1223 = vld [vmem:[%s725 + $0x80] sm:$0xff]
      %v1224 = vld [vmem:[%s725 + $0x88] sm:$0xff]
      %v1225 = vld [vmem:[%s725 + $0x90] sm:$0xff]
      %v1226 = vld [vmem:[%s725 + $0x98] sm:$0xff]
      %v1227 = vld [vmem:[%s725 + $0xa0] sm:$0xff]
      %v1228 = vld [vmem:[%s725 + $0xa8] sm:$0xff]
      %v1229 = vld [vmem:[%s725 + $0xb0] sm:$0xff]
      %v1230 = vld [vmem:[%s725 + $0xb8] sm:$0xff]
      %v1231 = vld [vmem:[%s725 + $0xc0] sm:$0xff]
      %v1232 = vld [vmem:[%s725 + $0xc8] sm:$0xff]
      %v1233 = vld [vmem:[%s725 + $0xd0] sm:$0xff]
      %v1234 = vld [vmem:[%s725 + $0xd8] sm:$0xff]
      %v1235 = vld [vmem:[%s725 + $0xe0] sm:$0xff]
      %v1236 = vld [vmem:[%s725 + $0xe8] sm:$0xff]
      %v1237 = vadd.f32 %v1207, %v1177
      %v1238 = vadd.f32 %v1208, %v1178
      %v1239 = vadd.f32 %v1209, %v1179
      %v1240 = vadd.f32 %v1210, %v1180
      %v1241 = vadd.f32 %v1211, %v1181
      %v1242 = vadd.f32 %v1212, %v1182
      %v1243 = vadd.f32 %v1213, %v1183
      %v1244 = vadd.f32 %v1214, %v1184
      %v1245 = vadd.f32 %v1215, %v1185
      %v1246 = vadd.f32 %v1216, %v1186
      %v1247 = vadd.f32 %v1217, %v1187
      %v1248 = vadd.f32 %v1218, %v1188
      %v1249 = vadd.f32 %v1219, %v1189
      %v1250 = vadd.f32 %v1220, %v1190
      %v1251 = vadd.f32 %v1221, %v1191
      %v1252 = vadd.f32 %v1222, %v1192
      %v1253 = vadd.f32 %v1223, %v1193
      %v1254 = vadd.f32 %v1224, %v1194
      %v1255 = vadd.f32 %v1225, %v1195
      %v1256 = vadd.f32 %v1226, %v1196
      %v1257 = vadd.f32 %v1227, %v1197
      %v1258 = vadd.f32 %v1228, %v1198
      %v1259 = vadd.f32 %v1229, %v1199
      %v1260 = vadd.f32 %v1230, %v1200
      %v1261 = vadd.f32 %v1231, %v1201
      %v1262 = vadd.f32 %v1232, %v1202
      %v1263 = vadd.f32 %v1233, %v1203
      %v1264 = vadd.f32 %v1234, %v1204
      %v1265 = vadd.f32 %v1235, %v1205
      %v1266 = vadd.f32 %v1236, %v1206
      %1267 = vst [vmem:[%s725] sm:$0xff] %v1237
      %1268 = vst [vmem:[%s725 + $0x8] sm:$0xff] %v1238
      %1269 = vst [vmem:[%s725 + $0x10] sm:$0xff] %v1239
      %1270 = vst [vmem:[%s725 + $0x18] sm:$0xff] %v1240
      %1271 = vst [vmem:[%s725 + $0x20] sm:$0xff] %v1241
      %1272 = vst [vmem:[%s725 + $0x28] sm:$0xff] %v1242
      %1273 = vst [vmem:[%s725 + $0x30] sm:$0xff] %v1243
      %1274 = vst [vmem:[%s725 + $0x38] sm:$0xff] %v1244
      %1275 = vst [vmem:[%s725 + $0x40] sm:$0xff] %v1245
      %1276 = vst [vmem:[%s725 + $0x48] sm:$0xff] %v1246
      %1277 = vst [vmem:[%s725 + $0x50] sm:$0xff] %v1247
      %1278 = vst [vmem:[%s725 + $0x58] sm:$0xff] %v1248
      %1279 = vst [vmem:[%s725 + $0x60] sm:$0xff] %v1249
      %1280 = vst [vmem:[%s725 + $0x68] sm:$0xff] %v1250
      %1281 = vst [vmem:[%s725 + $0x70] sm:$0xff] %v1251
      %1282 = vst [vmem:[%s725 + $0x78] sm:$0xff] %v1252
      %1283 = vst [vmem:[%s725 + $0x80] sm:$0xff] %v1253
      %1284 = vst [vmem:[%s725 + $0x88] sm:$0xff] %v1254
      %1285 = vst [vmem:[%s725 + $0x90] sm:$0xff] %v1255
      %1286 = vst [vmem:[%s725 + $0x98] sm:$0xff] %v1256
      %1287 = vst [vmem:[%s725 + $0xa0] sm:$0xff] %v1257
      %1288 = vst [vmem:[%s725 + $0xa8] sm:$0xff] %v1258
      %1289 = vst [vmem:[%s725 + $0xb0] sm:$0xff] %v1259
      %1290 = vst [vmem:[%s725 + $0xb8] sm:$0xff] %v1260
      %1291 = vst [vmem:[%s725 + $0xc0] sm:$0xff] %v1261
      %1292 = vst [vmem:[%s725 + $0xc8] sm:$0xff] %v1262
      %1293 = vst [vmem:[%s725 + $0xd0] sm:$0xff] %v1263
      %1294 = vst [vmem:[%s725 + $0xd8] sm:$0xff] %v1264
      %1295 = vst [vmem:[%s725 + $0xe0] sm:$0xff] %v1265
      %1296 = vst [vmem:[%s725 + $0xe8] sm:$0xff] %v1266
      %v1297 = vlaneseq
      %v1298 = vshrl.u32 %v1297, 7
      %v1299 = vsub.s32 6, %v1298
      %v1300 = vrot.slane %v614, %v1299
      %v1301 = vmul.f32 %v1011, %v1300
      %v1302 = vmul.f32 %v1012, %v1300
      %v1303 = vmul.f32 %v1013, %v1300
      %v1304 = vmul.f32 %v1014, %v1300
      %v1305 = vmul.f32 %v1015, %v1300
      %v1306 = vmul.f32 %v1016, %v1300
      %v1307 = vmul.f32 %v1017, %v1300
      %v1308 = vmul.f32 %v1018, %v1300
      %v1309 = vmul.f32 %v1019, %v1300
      %v1310 = vmul.f32 %v1020, %v1300
      %v1311 = vmul.f32 %v1021, %v1300
      %v1312 = vmul.f32 %v1022, %v1300
      %v1313 = vmul.f32 %v1023, %v1300
      %v1314 = vmul.f32 %v1024, %v1300
      %v1315 = vmul.f32 %v1025, %v1300
      %v1316 = vmul.f32 %v1026, %v1300
      %v1317 = vmul.f32 %v1027, %v1300
      %v1318 = vmul.f32 %v1028, %v1300
      %v1319 = vmul.f32 %v1029, %v1300
      %v1320 = vmul.f32 %v1030, %v1300
      %v1321 = vmul.f32 %v1031, %v1300
      %v1322 = vmul.f32 %v1032, %v1300
      %v1323 = vmul.f32 %v1033, %v1300
      %v1324 = vmul.f32 %v1034, %v1300
      %v1325 = vmul.f32 %v1035, %v1300
      %v1326 = vmul.f32 %v1036, %v1300
      %v1327 = vmul.f32 %v1037, %v1300
      %v1328 = vmul.f32 %v1038, %v1300
      %v1329 = vmul.f32 %v1039, %v1300
      %v1330 = vmul.f32 %v1040, %v1300
      %v1331 = vld [vmem:[#allocation2] sm:$0xff]
      %v1332 = vld [vmem:[#allocation2 + $0x8] sm:$0xff]
      %v1333 = vld [vmem:[#allocation2 + $0x10] sm:$0xff]
      %v1334 = vld [vmem:[#allocation2 + $0x18] sm:$0xff]
      %v1335 = vld [vmem:[#allocation2 + $0x20] sm:$0xff]
      %v1336 = vld [vmem:[#allocation2 + $0x28] sm:$0xff]
      %v1337 = vld [vmem:[#allocation2 + $0x30] sm:$0xff]
      %v1338 = vld [vmem:[#allocation2 + $0x38] sm:$0xff]
      %v1339 = vld [vmem:[#allocation2 + $0x40] sm:$0xff]
      %v1340 = vld [vmem:[#allocation2 + $0x48] sm:$0xff]
      %v1341 = vld [vmem:[#allocation2 + $0x50] sm:$0xff]
      %v1342 = vld [vmem:[#allocation2 + $0x58] sm:$0xff]
      %v1343 = vld [vmem:[#allocation2 + $0x60] sm:$0xff]
      %v1344 = vld [vmem:[#allocation2 + $0x68] sm:$0xff]
      %v1345 = vld [vmem:[#allocation2 + $0x70] sm:$0xff]
      %v1346 = vld [vmem:[#allocation2 + $0x78] sm:$0xff]
      %v1347 = vld [vmem:[#allocation2 + $0x80] sm:$0xff]
      %v1348 = vld [vmem:[#allocation2 + $0x88] sm:$0xff]
      %v1349 = vld [vmem:[#allocation2 + $0x90] sm:$0xff]
      %v1350 = vld [vmem:[#allocation2 + $0x98] sm:$0xff]
      %v1351 = vld [vmem:[#allocation2 + $0xa0] sm:$0xff]
      %v1352 = vld [vmem:[#allocation2 + $0xa8] sm:$0xff]
      %v1353 = vld [vmem:[#allocation2 + $0xb0] sm:$0xff]
      %v1354 = vld [vmem:[#allocation2 + $0xb8] sm:$0xff]
      %v1355 = vld [vmem:[#allocation2 + $0xc0] sm:$0xff]
      %v1356 = vld [vmem:[#allocation2 + $0xc8] sm:$0xff]
      %v1357 = vld [vmem:[#allocation2 + $0xd0] sm:$0xff]
      %v1358 = vld [vmem:[#allocation2 + $0xd8] sm:$0xff]
      %v1359 = vld [vmem:[#allocation2 + $0xe0] sm:$0xff]
      %v1360 = vld [vmem:[#allocation2 + $0xe8] sm:$0xff]
      %v1361 = vadd.f32 %v1331, %v1301
      %v1362 = vadd.f32 %v1332, %v1302
      %v1363 = vadd.f32 %v1333, %v1303
      %v1364 = vadd.f32 %v1334, %v1304
      %v1365 = vadd.f32 %v1335, %v1305
      %v1366 = vadd.f32 %v1336, %v1306
      %v1367 = vadd.f32 %v1337, %v1307
      %v1368 = vadd.f32 %v1338, %v1308
      %v1369 = vadd.f32 %v1339, %v1309
      %v1370 = vadd.f32 %v1340, %v1310
      %v1371 = vadd.f32 %v1341, %v1311
      %v1372 = vadd.f32 %v1342, %v1312
      %v1373 = vadd.f32 %v1343, %v1313
      %v1374 = vadd.f32 %v1344, %v1314
      %v1375 = vadd.f32 %v1345, %v1315
      %v1376 = vadd.f32 %v1346, %v1316
      %v1377 = vadd.f32 %v1347, %v1317
      %v1378 = vadd.f32 %v1348, %v1318
      %v1379 = vadd.f32 %v1349, %v1319
      %v1380 = vadd.f32 %v1350, %v1320
      %v1381 = vadd.f32 %v1351, %v1321
      %v1382 = vadd.f32 %v1352, %v1322
      %v1383 = vadd.f32 %v1353, %v1323
      %v1384 = vadd.f32 %v1354, %v1324
      %v1385 = vadd.f32 %v1355, %v1325
      %v1386 = vadd.f32 %v1356, %v1326
      %v1387 = vadd.f32 %v1357, %v1327
      %v1388 = vadd.f32 %v1358, %v1328
      %v1389 = vadd.f32 %v1359, %v1329
      %v1390 = vadd.f32 %v1360, %v1330
      %1391 = vst [vmem:[#allocation2] sm:$0xff] %v1361
      %1392 = vst [vmem:[#allocation2 + $0x8] sm:$0xff] %v1362
      %1393 = vst [vmem:[#allocation2 + $0x10] sm:$0xff] %v1363
      %1394 = vst [vmem:[#allocation2 + $0x18] sm:$0xff] %v1364
      %1395 = vst [vmem:[#allocation2 + $0x20] sm:$0xff] %v1365
      %1396 = vst [vmem:[#allocation2 + $0x28] sm:$0xff] %v1366
      %1397 = vst [vmem:[#allocation2 + $0x30] sm:$0xff] %v1367
      %1398 = vst [vmem:[#allocation2 + $0x38] sm:$0xff] %v1368
      %1399 = vst [vmem:[#allocation2 + $0x40] sm:$0xff] %v1369
      %1400 = vst [vmem:[#allocation2 + $0x48] sm:$0xff] %v1370
      %1401 = vst [vmem:[#allocation2 + $0x50] sm:$0xff] %v1371
      %1402 = vst [vmem:[#allocation2 + $0x58] sm:$0xff] %v1372
      %1403 = vst [vmem:[#allocation2 + $0x60] sm:$0xff] %v1373
      %1404 = vst [vmem:[#allocation2 + $0x68] sm:$0xff] %v1374
      %1405 = vst [vmem:[#allocation2 + $0x70] sm:$0xff] %v1375
      %1406 = vst [vmem:[#allocation2 + $0x78] sm:$0xff] %v1376
      %1407 = vst [vmem:[#allocation2 + $0x80] sm:$0xff] %v1377
      %1408 = vst [vmem:[#allocation2 + $0x88] sm:$0xff] %v1378
      %1409 = vst [vmem:[#allocation2 + $0x90] sm:$0xff] %v1379
      %1410 = vst [vmem:[#allocation2 + $0x98] sm:$0xff] %v1380
      %1411 = vst [vmem:[#allocation2 + $0xa0] sm:$0xff] %v1381
      %1412 = vst [vmem:[#allocation2 + $0xa8] sm:$0xff] %v1382
      %1413 = vst [vmem:[#allocation2 + $0xb0] sm:$0xff] %v1383
      %1414 = vst [vmem:[#allocation2 + $0xb8] sm:$0xff] %v1384
      %1415 = vst [vmem:[#allocation2 + $0xc0] sm:$0xff] %v1385
      %1416 = vst [vmem:[#allocation2 + $0xc8] sm:$0xff] %v1386
      %1417 = vst [vmem:[#allocation2 + $0xd0] sm:$0xff] %v1387
      %1418 = vst [vmem:[#allocation2 + $0xd8] sm:$0xff] %v1388
      %1419 = vst [vmem:[#allocation2 + $0xe0] sm:$0xff] %v1389
      %1420 = vst [vmem:[#allocation2 + $0xe8] sm:$0xff] %v1390
      %v1421 = vrot.slane %v582, 1
      %v1422 = vrot.slane %v584, 1
      %v1423 = vrot.slane %v586, 1
      %v1424 = vrot.slane %v588, 1
      %v1425 = vrot.slane %v590, 1
      %v1426 = vrot.slane %v592, 1
      %v1427 = vrot.slane %v594, 1
      %v1428 = vrot.slane %v596, 1
      %v1429 = vrot.slane %v598, 1
      %v1430 = vrot.slane %v600, 1
      %v1431 = vrot.slane %v602, 1
      %v1432 = vrot.slane %v604, 1
      %v1433 = vrot.slane %v606, 1
      %v1434 = vrot.slane %v608, 1
      %v1435 = vrot.slane %v610, 1
      %v1436 = vrot.slane %v612, 1
      %v1437 = vrot.slane %v583, 1
      %v1438 = vrot.slane %v585, 1
      %v1439 = vrot.slane %v587, 1
      %v1440 = vrot.slane %v589, 1
      %v1441 = vrot.slane %v591, 1
      %v1442 = vrot.slane %v593, 1
      %v1443 = vrot.slane %v595, 1
      %v1444 = vrot.slane %v597, 1
      %v1445 = vrot.slane %v599, 1
      %v1446 = vrot.slane %v601, 1
      %v1447 = vrot.slane %v603, 1
      %v1448 = vrot.slane %v605, 1
      %v1449 = vrot.slane %v607, 1
      %v1450 = vrot.slane %v609, 1
      %v1451 = vrot.slane %v611, 1
      %v1452 = vrot.slane %v613, 1
      %vm1453 = vcmp.lt.s32.totalorder %v617, 7
      %v1454 = vsel %vm1453, %v1421, %v1437
      %v1455 = vsel %vm1453, %v1422, %v1438
      %v1456 = vsel %vm1453, %v1423, %v1439
      %v1457 = vsel %vm1453, %v1424, %v1440
      %v1458 = vsel %vm1453, %v1425, %v1441
      %v1459 = vsel %vm1453, %v1426, %v1442
      %v1460 = vsel %vm1453, %v1427, %v1443
      %v1461 = vsel %vm1453, %v1428, %v1444
      %v1462 = vsel %vm1453, %v1429, %v1445
      %v1463 = vsel %vm1453, %v1430, %v1446
      %v1464 = vsel %vm1453, %v1431, %v1447
      %v1465 = vsel %vm1453, %v1432, %v1448
      %v1466 = vsel %vm1453, %v1433, %v1449
      %v1467 = vsel %vm1453, %v1434, %v1450
      %v1468 = vsel %vm1453, %v1435, %v1451
      %v1469 = vsel %vm1453, %v1436, %v1452
      %v1470 = vsel %vm1453, %v1437, %v1421
      %v1471 = vsel %vm1453, %v1438, %v1422
      %v1472 = vsel %vm1453, %v1439, %v1423
      %v1473 = vsel %vm1453, %v1440, %v1424
      %v1474 = vsel %vm1453, %v1441, %v1425
      %v1475 = vsel %vm1453, %v1442, %v1426
      %v1476 = vsel %vm1453, %v1443, %v1427
      %v1477 = vsel %vm1453, %v1444, %v1428
      %v1478 = vsel %vm1453, %v1445, %v1429
      %v1479 = vsel %vm1453, %v1446, %v1430
      %v1480 = vsel %vm1453, %v1447, %v1431
      %v1481 = vsel %vm1453, %v1448, %v1432
      %v1482 = vsel %vm1453, %v1449, %v1433
      %v1483 = vsel %vm1453, %v1450, %v1434
      %v1484 = vsel %vm1453, %v1451, %v1435
      %v1485 = vsel %vm1453, %v1452, %v1436
      %v1486 = vsel %vm621, 1, 0
      %v1487 = vsel %vm622, 1, 0
      %vm1488 = vcmp.eq.s32.totalorder %v1486, 1
      %vm1489 = vcmp.eq.s32.totalorder %v1487, 1
      %v1490 = vsel %vm1488, %v1454, 0.0
      %v1491 = vsel %vm1489, %v1470, 0.0
      %v1492 = vsel %vm1488, %v1455, 0.0
      %v1493 = vsel %vm1489, %v1471, 0.0
      %v1494 = vsel %vm1488, %v1456, 0.0
      %v1495 = vsel %vm1489, %v1472, 0.0
      %v1496 = vsel %vm1488, %v1457, 0.0
      %v1497 = vsel %vm1489, %v1473, 0.0
      %v1498 = vsel %vm1488, %v1458, 0.0
      %v1499 = vsel %vm1489, %v1474, 0.0
      %v1500 = vsel %vm1488, %v1459, 0.0
      %v1501 = vsel %vm1489, %v1475, 0.0
      %v1502 = vsel %vm1488, %v1460, 0.0
      %v1503 = vsel %vm1489, %v1476, 0.0
      %v1504 = vsel %vm1488, %v1461, 0.0
      %v1505 = vsel %vm1489, %v1477, 0.0
      %v1506 = vsel %vm1488, %v1462, 0.0
      %v1507 = vsel %vm1489, %v1478, 0.0
      %v1508 = vsel %vm1488, %v1463, 0.0
      %v1509 = vsel %vm1489, %v1479, 0.0
      %v1510 = vsel %vm1488, %v1464, 0.0
      %v1511 = vsel %vm1489, %v1480, 0.0
      %v1512 = vsel %vm1488, %v1465, 0.0
      %v1513 = vsel %vm1489, %v1481, 0.0
      %v1514 = vsel %vm1488, %v1466, 0.0
      %v1515 = vsel %vm1489, %v1482, 0.0
      %v1516 = vsel %vm1488, %v1467, 0.0
      %v1517 = vsel %vm1489, %v1483, 0.0
      %v1518 = vsel %vm1488, %v1468, 0.0
      %v1519 = vsel %vm1489, %v1484, 0.0
      %v1520 = vsel %vm1488, %v1469, 0.0
      %v1521 = vsel %vm1489, %v1485, 0.0
      %v1522 = vlaneseq
      %v1523 = vshrl.u32 %v1522, 7
      %v1524 = vsub.s32 5, %v1523
      %v1525 = vrot.slane %v614, %v1524
      %v1526 = vmul.f32 %v1490, %v1525
      %v1527 = vmul.f32 %v1491, %v1525
      %v1528 = vmul.f32 %v1492, %v1525
      %v1529 = vmul.f32 %v1493, %v1525
      %v1530 = vmul.f32 %v1494, %v1525
      %v1531 = vmul.f32 %v1495, %v1525
      %v1532 = vmul.f32 %v1496, %v1525
      %v1533 = vmul.f32 %v1497, %v1525
      %v1534 = vmul.f32 %v1498, %v1525
      %v1535 = vmul.f32 %v1499, %v1525
      %v1536 = vmul.f32 %v1500, %v1525
      %v1537 = vmul.f32 %v1501, %v1525
      %v1538 = vmul.f32 %v1502, %v1525
      %v1539 = vmul.f32 %v1503, %v1525
      %v1540 = vmul.f32 %v1504, %v1525
      %v1541 = vmul.f32 %v1505, %v1525
      %v1542 = vmul.f32 %v1506, %v1525
      %v1543 = vmul.f32 %v1507, %v1525
      %v1544 = vmul.f32 %v1508, %v1525
      %v1545 = vmul.f32 %v1509, %v1525
      %v1546 = vmul.f32 %v1510, %v1525
      %v1547 = vmul.f32 %v1511, %v1525
      %v1548 = vmul.f32 %v1512, %v1525
      %v1549 = vmul.f32 %v1513, %v1525
      %v1550 = vmul.f32 %v1514, %v1525
      %v1551 = vmul.f32 %v1515, %v1525
      %v1552 = vmul.f32 %v1516, %v1525
      %v1553 = vmul.f32 %v1517, %v1525
      %v1554 = vmul.f32 %v1518, %v1525
      %v1555 = vmul.f32 %v1519, %v1525
      %v1556 = vmul.f32 %v1520, %v1525
      %v1557 = vmul.f32 %v1521, %v1525
      %v1558 = vld [vmem:[#allocation2] sm:$0xff]
      %v1559 = vld [vmem:[#allocation2 + $0x8] sm:$0xff]
      %v1560 = vld [vmem:[#allocation2 + $0x10] sm:$0xff]
      %v1561 = vld [vmem:[#allocation2 + $0x18] sm:$0xff]
      %v1562 = vld [vmem:[#allocation2 + $0x20] sm:$0xff]
      %v1563 = vld [vmem:[#allocation2 + $0x28] sm:$0xff]
      %v1564 = vld [vmem:[#allocation2 + $0x30] sm:$0xff]
      %v1565 = vld [vmem:[#allocation2 + $0x38] sm:$0xff]
      %v1566 = vld [vmem:[#allocation2 + $0x40] sm:$0xff]
      %v1567 = vld [vmem:[#allocation2 + $0x48] sm:$0xff]
      %v1568 = vld [vmem:[#allocation2 + $0x50] sm:$0xff]
      %v1569 = vld [vmem:[#allocation2 + $0x58] sm:$0xff]
      %v1570 = vld [vmem:[#allocation2 + $0x60] sm:$0xff]
      %v1571 = vld [vmem:[#allocation2 + $0x68] sm:$0xff]
      %v1572 = vld [vmem:[#allocation2 + $0x70] sm:$0xff]
      %v1573 = vld [vmem:[#allocation2 + $0x78] sm:$0xff]
      %v1574 = vld [vmem:[#allocation2 + $0x80] sm:$0xff]
      %v1575 = vld [vmem:[#allocation2 + $0x88] sm:$0xff]
      %v1576 = vld [vmem:[#allocation2 + $0x90] sm:$0xff]
      %v1577 = vld [vmem:[#allocation2 + $0x98] sm:$0xff]
      %v1578 = vld [vmem:[#allocation2 + $0xa0] sm:$0xff]
      %v1579 = vld [vmem:[#allocation2 + $0xa8] sm:$0xff]
      %v1580 = vld [vmem:[#allocation2 + $0xb0] sm:$0xff]
      %v1581 = vld [vmem:[#allocation2 + $0xb8] sm:$0xff]
      %v1582 = vld [vmem:[#allocation2 + $0xc0] sm:$0xff]
      %v1583 = vld [vmem:[#allocation2 + $0xc8] sm:$0xff]
      %v1584 = vld [vmem:[#allocation2 + $0xd0] sm:$0xff]
      %v1585 = vld [vmem:[#allocation2 + $0xd8] sm:$0xff]
      %v1586 = vld [vmem:[#allocation2 + $0xe0] sm:$0xff]
      %v1587 = vld [vmem:[#allocation2 + $0xe8] sm:$0xff]
      %v1588 = vld [vmem:[#allocation2 + $0xf0] sm:$0xff]
      %v1589 = vld [vmem:[#allocation2 + $0xf8] sm:$0xff]
      %v1590 = vadd.f32 %v1558, %v1526
      %v1591 = vadd.f32 %v1559, %v1527
      %v1592 = vadd.f32 %v1560, %v1528
      %v1593 = vadd.f32 %v1561, %v1529
      %v1594 = vadd.f32 %v1562, %v1530
      %v1595 = vadd.f32 %v1563, %v1531
      %v1596 = vadd.f32 %v1564, %v1532
      %v1597 = vadd.f32 %v1565, %v1533
      %v1598 = vadd.f32 %v1566, %v1534
      %v1599 = vadd.f32 %v1567, %v1535
      %v1600 = vadd.f32 %v1568, %v1536
      %v1601 = vadd.f32 %v1569, %v1537
      %v1602 = vadd.f32 %v1570, %v1538
      %v1603 = vadd.f32 %v1571, %v1539
      %v1604 = vadd.f32 %v1572, %v1540
      %v1605 = vadd.f32 %v1573, %v1541
      %v1606 = vadd.f32 %v1574, %v1542
      %v1607 = vadd.f32 %v1575, %v1543
      %v1608 = vadd.f32 %v1576, %v1544
      %v1609 = vadd.f32 %v1577, %v1545
      %v1610 = vadd.f32 %v1578, %v1546
      %v1611 = vadd.f32 %v1579, %v1547
      %v1612 = vadd.f32 %v1580, %v1548
      %v1613 = vadd.f32 %v1581, %v1549
      %v1614 = vadd.f32 %v1582, %v1550
      %v1615 = vadd.f32 %v1583, %v1551
      %v1616 = vadd.f32 %v1584, %v1552
      %v1617 = vadd.f32 %v1585, %v1553
      %v1618 = vadd.f32 %v1586, %v1554
      %v1619 = vadd.f32 %v1587, %v1555
      %v1620 = vadd.f32 %v1588, %v1556
      %v1621 = vadd.f32 %v1589, %v1557
      %1622 = vst [vmem:[#allocation2] sm:$0xff] %v1590
      %1623 = vst [vmem:[#allocation2 + $0x8] sm:$0xff] %v1591
      %1624 = vst [vmem:[#allocation2 + $0x10] sm:$0xff] %v1592
      %1625 = vst [vmem:[#allocation2 + $0x18] sm:$0xff] %v1593
      %1626 = vst [vmem:[#allocation2 + $0x20] sm:$0xff] %v1594
      %1627 = vst [vmem:[#allocation2 + $0x28] sm:$0xff] %v1595
      %1628 = vst [vmem:[#allocation2 + $0x30] sm:$0xff] %v1596
      %1629 = vst [vmem:[#allocation2 + $0x38] sm:$0xff] %v1597
      %1630 = vst [vmem:[#allocation2 + $0x40] sm:$0xff] %v1598
      %1631 = vst [vmem:[#allocation2 + $0x48] sm:$0xff] %v1599
      %1632 = vst [vmem:[#allocation2 + $0x50] sm:$0xff] %v1600
      %1633 = vst [vmem:[#allocation2 + $0x58] sm:$0xff] %v1601
      %1634 = vst [vmem:[#allocation2 + $0x60] sm:$0xff] %v1602
      %1635 = vst [vmem:[#allocation2 + $0x68] sm:$0xff] %v1603
      %1636 = vst [vmem:[#allocation2 + $0x70] sm:$0xff] %v1604
      %1637 = vst [vmem:[#allocation2 + $0x78] sm:$0xff] %v1605
      %1638 = vst [vmem:[#allocation2 + $0x80] sm:$0xff] %v1606
      %1639 = vst [vmem:[#allocation2 + $0x88] sm:$0xff] %v1607
      %1640 = vst [vmem:[#allocation2 + $0x90] sm:$0xff] %v1608
      %1641 = vst [vmem:[#allocation2 + $0x98] sm:$0xff] %v1609
      %1642 = vst [vmem:[#allocation2 + $0xa0] sm:$0xff] %v1610
      %1643 = vst [vmem:[#allocation2 + $0xa8] sm:$0xff] %v1611
      %1644 = vst [vmem:[#allocation2 + $0xb0] sm:$0xff] %v1612
      %1645 = vst [vmem:[#allocation2 + $0xb8] sm:$0xff] %v1613
      %1646 = vst [vmem:[#allocation2 + $0xc0] sm:$0xff] %v1614
      %1647 = vst [vmem:[#allocation2 + $0xc8] sm:$0xff] %v1615
      %1648 = vst [vmem:[#allocation2 + $0xd0] sm:$0xff] %v1616
      %1649 = vst [vmem:[#allocation2 + $0xd8] sm:$0xff] %v1617
      %1650 = vst [vmem:[#allocation2 + $0xe0] sm:$0xff] %v1618
      %1651 = vst [vmem:[#allocation2 + $0xe8] sm:$0xff] %v1619
      %1652 = vst [vmem:[#allocation2 + $0xf0] sm:$0xff] %v1620
      %1653 = vst [vmem:[#allocation2 + $0xf8] sm:$0xff] %v1621
      %v1654 = vlaneseq
      %v1655 = vshrl.u32 %v1654, 7
      %v1656 = vsub.s32 2, %v1655
      %v1657 = vrot.slane %v614, %v1656
      %v1658 = vmul.f32 %v1490, %v1657
      %v1659 = vmul.f32 %v1491, %v1657
      %v1660 = vmul.f32 %v1492, %v1657
      %v1661 = vmul.f32 %v1493, %v1657
      %v1662 = vmul.f32 %v1494, %v1657
      %v1663 = vmul.f32 %v1495, %v1657
      %v1664 = vmul.f32 %v1496, %v1657
      %v1665 = vmul.f32 %v1497, %v1657
      %v1666 = vmul.f32 %v1498, %v1657
      %v1667 = vmul.f32 %v1499, %v1657
      %v1668 = vmul.f32 %v1500, %v1657
      %v1669 = vmul.f32 %v1501, %v1657
      %v1670 = vmul.f32 %v1502, %v1657
      %v1671 = vmul.f32 %v1503, %v1657
      %v1672 = vmul.f32 %v1504, %v1657
      %v1673 = vmul.f32 %v1505, %v1657
      %v1674 = vmul.f32 %v1506, %v1657
      %v1675 = vmul.f32 %v1507, %v1657
      %v1676 = vmul.f32 %v1508, %v1657
      %v1677 = vmul.f32 %v1509, %v1657
      %v1678 = vmul.f32 %v1510, %v1657
      %v1679 = vmul.f32 %v1511, %v1657
      %v1680 = vmul.f32 %v1512, %v1657
      %v1681 = vmul.f32 %v1513, %v1657
      %v1682 = vmul.f32 %v1514, %v1657
      %v1683 = vmul.f32 %v1515, %v1657
      %v1684 = vmul.f32 %v1516, %v1657
      %v1685 = vmul.f32 %v1517, %v1657
      %v1686 = vmul.f32 %v1518, %v1657
      %v1687 = vmul.f32 %v1519, %v1657
      %v1688 = vld [vmem:[%s725] sm:$0xff]
      %v1689 = vld [vmem:[%s725 + $0x8] sm:$0xff]
      %v1690 = vld [vmem:[%s725 + $0x10] sm:$0xff]
      %v1691 = vld [vmem:[%s725 + $0x18] sm:$0xff]
      %v1692 = vld [vmem:[%s725 + $0x20] sm:$0xff]
      %v1693 = vld [vmem:[%s725 + $0x28] sm:$0xff]
      %v1694 = vld [vmem:[%s725 + $0x30] sm:$0xff]
      %v1695 = vld [vmem:[%s725 + $0x38] sm:$0xff]
      %v1696 = vld [vmem:[%s725 + $0x40] sm:$0xff]
      %v1697 = vld [vmem:[%s725 + $0x48] sm:$0xff]
      %v1698 = vld [vmem:[%s725 + $0x50] sm:$0xff]
      %v1699 = vld [vmem:[%s725 + $0x58] sm:$0xff]
      %v1700 = vld [vmem:[%s725 + $0x60] sm:$0xff]
      %v1701 = vld [vmem:[%s725 + $0x68] sm:$0xff]
      %v1702 = vld [vmem:[%s725 + $0x70] sm:$0xff]
      %v1703 = vld [vmem:[%s725 + $0x78] sm:$0xff]
      %v1704 = vld [vmem:[%s725 + $0x80] sm:$0xff]
      %v1705 = vld [vmem:[%s725 + $0x88] sm:$0xff]
      %v1706 = vld [vmem:[%s725 + $0x90] sm:$0xff]
      %v1707 = vld [vmem:[%s725 + $0x98] sm:$0xff]
      %v1708 = vld [vmem:[%s725 + $0xa0] sm:$0xff]
      %v1709 = vld [vmem:[%s725 + $0xa8] sm:$0xff]
      %v1710 = vld [vmem:[%s725 + $0xb0] sm:$0xff]
      %v1711 = vld [vmem:[%s725 + $0xb8] sm:$0xff]
      %v1712 = vld [vmem:[%s725 + $0xc0] sm:$0xff]
      %v1713 = vld [vmem:[%s725 + $0xc8] sm:$0xff]
      %v1714 = vld [vmem:[%s725 + $0xd0] sm:$0xff]
      %v1715 = vld [vmem:[%s725 + $0xd8] sm:$0xff]
      %v1716 = vld [vmem:[%s725 + $0xe0] sm:$0xff]
      %v1717 = vld [vmem:[%s725 + $0xe8] sm:$0xff]
      %v1718 = vadd.f32 %v1688, %v1658
      %v1719 = vadd.f32 %v1689, %v1659
      %v1720 = vadd.f32 %v1690, %v1660
      %v1721 = vadd.f32 %v1691, %v1661
      %v1722 = vadd.f32 %v1692, %v1662
      %v1723 = vadd.f32 %v1693, %v1663
      %v1724 = vadd.f32 %v1694, %v1664
      %v1725 = vadd.f32 %v1695, %v1665
      %v1726 = vadd.f32 %v1696, %v1666
      %v1727 = vadd.f32 %v1697, %v1667
      %v1728 = vadd.f32 %v1698, %v1668
      %v1729 = vadd.f32 %v1699, %v1669
      %v1730 = vadd.f32 %v1700, %v1670
      %v1731 = vadd.f32 %v1701, %v1671
      %v1732 = vadd.f32 %v1702, %v1672
      %v1733 = vadd.f32 %v1703, %v1673
      %v1734 = vadd.f32 %v1704, %v1674
      %v1735 = vadd.f32 %v1705, %v1675
      %v1736 = vadd.f32 %v1706, %v1676
      %v1737 = vadd.f32 %v1707, %v1677
      %v1738 = vadd.f32 %v1708, %v1678
      %v1739 = vadd.f32 %v1709, %v1679
      %v1740 = vadd.f32 %v1710, %v1680
      %v1741 = vadd.f32 %v1711, %v1681
      %v1742 = vadd.f32 %v1712, %v1682
      %v1743 = vadd.f32 %v1713, %v1683
      %v1744 = vadd.f32 %v1714, %v1684
      %v1745 = vadd.f32 %v1715, %v1685
      %v1746 = vadd.f32 %v1716, %v1686
      %v1747 = vadd.f32 %v1717, %v1687
      %1748 = vst [vmem:[%s725] sm:$0xff] %v1718
      %1749 = vst [vmem:[%s725 + $0x8] sm:$0xff] %v1719
      %1750 = vst [vmem:[%s725 + $0x10] sm:$0xff] %v1720
      %1751 = vst [vmem:[%s725 + $0x18] sm:$0xff] %v1721
      %1752 = vst [vmem:[%s725 + $0x20] sm:$0xff] %v1722
      %1753 = vst [vmem:[%s725 + $0x28] sm:$0xff] %v1723
      %1754 = vst [vmem:[%s725 + $0x30] sm:$0xff] %v1724
      %1755 = vst [vmem:[%s725 + $0x38] sm:$0xff] %v1725
      %1756 = vst [vmem:[%s725 + $0x40] sm:$0xff] %v1726
      %1757 = vst [vmem:[%s725 + $0x48] sm:$0xff] %v1727
      %1758 = vst [vmem:[%s725 + $0x50] sm:$0xff] %v1728
      %1759 = vst [vmem:[%s725 + $0x58] sm:$0xff] %v1729
      %1760 = vst [vmem:[%s725 + $0x60] sm:$0xff] %v1730
      %1761 = vst [vmem:[%s725 + $0x68] sm:$0xff] %v1731
      %1762 = vst [vmem:[%s725 + $0x70] sm:$0xff] %v1732
      %1763 = vst [vmem:[%s725 + $0x78] sm:$0xff] %v1733
      %1764 = vst [vmem:[%s725 + $0x80] sm:$0xff] %v1734
      %1765 = vst [vmem:[%s725 + $0x88] sm:$0xff] %v1735
      %1766 = vst [vmem:[%s725 + $0x90] sm:$0xff] %v1736
      %1767 = vst [vmem:[%s725 + $0x98] sm:$0xff] %v1737
      %1768 = vst [vmem:[%s725 + $0xa0] sm:$0xff] %v1738
      %1769 = vst [vmem:[%s725 + $0xa8] sm:$0xff] %v1739
      %1770 = vst [vmem:[%s725 + $0xb0] sm:$0xff] %v1740
      %1771 = vst [vmem:[%s725 + $0xb8] sm:$0xff] %v1741
      %1772 = vst [vmem:[%s725 + $0xc0] sm:$0xff] %v1742
      %1773 = vst [vmem:[%s725 + $0xc8] sm:$0xff] %v1743
      %1774 = vst [vmem:[%s725 + $0xd0] sm:$0xff] %v1744
      %1775 = vst [vmem:[%s725 + $0xd8] sm:$0xff] %v1745
      %1776 = vst [vmem:[%s725 + $0xe0] sm:$0xff] %v1746
      %1777 = vst [vmem:[%s725 + $0xe8] sm:$0xff] %v1747
      %v1778 = vlaneseq
      %v1779 = vshrl.u32 %v1778, 7
      %v1780 = vsub.s32 0, %v1779
      %v1781 = vrot.slane %v615, %v1780
      %v1782 = vmul.f32 %v1492, %v1781
      %v1783 = vmul.f32 %v1493, %v1781
      %v1784 = vmul.f32 %v1494, %v1781
      %v1785 = vmul.f32 %v1495, %v1781
      %v1786 = vmul.f32 %v1496, %v1781
      %v1787 = vmul.f32 %v1497, %v1781
      %v1788 = vmul.f32 %v1498, %v1781
      %v1789 = vmul.f32 %v1499, %v1781
      %v1790 = vmul.f32 %v1500, %v1781
      %v1791 = vmul.f32 %v1501, %v1781
      %v1792 = vmul.f32 %v1502, %v1781
      %v1793 = vmul.f32 %v1503, %v1781
      %v1794 = vmul.f32 %v1504, %v1781
      %v1795 = vmul.f32 %v1505, %v1781
      %v1796 = vmul.f32 %v1506, %v1781
      %v1797 = vmul.f32 %v1507, %v1781
      %v1798 = vmul.f32 %v1508, %v1781
      %v1799 = vmul.f32 %v1509, %v1781
      %v1800 = vmul.f32 %v1510, %v1781
      %v1801 = vmul.f32 %v1511, %v1781
      %v1802 = vmul.f32 %v1512, %v1781
      %v1803 = vmul.f32 %v1513, %v1781
      %v1804 = vmul.f32 %v1514, %v1781
      %v1805 = vmul.f32 %v1515, %v1781
      %v1806 = vmul.f32 %v1516, %v1781
      %v1807 = vmul.f32 %v1517, %v1781
      %v1808 = vmul.f32 %v1518, %v1781
      %v1809 = vmul.f32 %v1519, %v1781
      %v1810 = vmul.f32 %v1520, %v1781
      %v1811 = vmul.f32 %v1521, %v1781
      %v1812 = vld [vmem:[#allocation2] sm:$0xff]
      %v1813 = vld [vmem:[#allocation2 + $0x8] sm:$0xff]
      %v1814 = vld [vmem:[#allocation2 + $0x10] sm:$0xff]
      %v1815 = vld [vmem:[#allocation2 + $0x18] sm:$0xff]
      %v1816 = vld [vmem:[#allocation2 + $0x20] sm:$0xff]
      %v1817 = vld [vmem:[#allocation2 + $0x28] sm:$0xff]
      %v1818 = vld [vmem:[#allocation2 + $0x30] sm:$0xff]
      %v1819 = vld [vmem:[#allocation2 + $0x38] sm:$0xff]
      %v1820 = vld [vmem:[#allocation2 + $0x40] sm:$0xff]
      %v1821 = vld [vmem:[#allocation2 + $0x48] sm:$0xff]
      %v1822 = vld [vmem:[#allocation2 + $0x50] sm:$0xff]
      %v1823 = vld [vmem:[#allocation2 + $0x58] sm:$0xff]
      %v1824 = vld [vmem:[#allocation2 + $0x60] sm:$0xff]
      %v1825 = vld [vmem:[#allocation2 + $0x68] sm:$0xff]
      %v1826 = vld [vmem:[#allocation2 + $0x70] sm:$0xff]
      %v1827 = vld [vmem:[#allocation2 + $0x78] sm:$0xff]
      %v1828 = vld [vmem:[#allocation2 + $0x80] sm:$0xff]
      %v1829 = vld [vmem:[#allocation2 + $0x88] sm:$0xff]
      %v1830 = vld [vmem:[#allocation2 + $0x90] sm:$0xff]
      %v1831 = vld [vmem:[#allocation2 + $0x98] sm:$0xff]
      %v1832 = vld [vmem:[#allocation2 + $0xa0] sm:$0xff]
      %v1833 = vld [vmem:[#allocation2 + $0xa8] sm:$0xff]
      %v1834 = vld [vmem:[#allocation2 + $0xb0] sm:$0xff]
      %v1835 = vld [vmem:[#allocation2 + $0xb8] sm:$0xff]
      %v1836 = vld [vmem:[#allocation2 + $0xc0] sm:$0xff]
      %v1837 = vld [vmem:[#allocation2 + $0xc8] sm:$0xff]
      %v1838 = vld [vmem:[#allocation2 + $0xd0] sm:$0xff]
      %v1839 = vld [vmem:[#allocation2 + $0xd8] sm:$0xff]
      %v1840 = vld [vmem:[#allocation2 + $0xe0] sm:$0xff]
      %v1841 = vld [vmem:[#allocation2 + $0xe8] sm:$0xff]
      %v1842 = vadd.f32 %v1812, %v1782
      %v1843 = vadd.f32 %v1813, %v1783
      %v1844 = vadd.f32 %v1814, %v1784
      %v1845 = vadd.f32 %v1815, %v1785
      %v1846 = vadd.f32 %v1816, %v1786
      %v1847 = vadd.f32 %v1817, %v1787
      %v1848 = vadd.f32 %v1818, %v1788
      %v1849 = vadd.f32 %v1819, %v1789
      %v1850 = vadd.f32 %v1820, %v1790
      %v1851 = vadd.f32 %v1821, %v1791
      %v1852 = vadd.f32 %v1822, %v1792
      %v1853 = vadd.f32 %v1823, %v1793
      %v1854 = vadd.f32 %v1824, %v1794
      %v1855 = vadd.f32 %v1825, %v1795
      %v1856 = vadd.f32 %v1826, %v1796
      %v1857 = vadd.f32 %v1827, %v1797
      %v1858 = vadd.f32 %v1828, %v1798
      %v1859 = vadd.f32 %v1829, %v1799
      %v1860 = vadd.f32 %v1830, %v1800
      %v1861 = vadd.f32 %v1831, %v1801
      %v1862 = vadd.f32 %v1832, %v1802
      %v1863 = vadd.f32 %v1833, %v1803
      %v1864 = vadd.f32 %v1834, %v1804
      %v1865 = vadd.f32 %v1835, %v1805
      %v1866 = vadd.f32 %v1836, %v1806
      %v1867 = vadd.f32 %v1837, %v1807
      %v1868 = vadd.f32 %v1838, %v1808
      %v1869 = vadd.f32 %v1839, %v1809
      %v1870 = vadd.f32 %v1840, %v1810
      %v1871 = vadd.f32 %v1841, %v1811
      %1872 = vst [vmem:[#allocation2] sm:$0xff] %v1842
      %1873 = vst [vmem:[#allocation2 + $0x8] sm:$0xff] %v1843
      %1874 = vst [vmem:[#allocation2 + $0x10] sm:$0xff] %v1844
      %1875 = vst [vmem:[#allocation2 + $0x18] sm:$0xff] %v1845
      %1876 = vst [vmem:[#allocation2 + $0x20] sm:$0xff] %v1846
      %1877 = vst [vmem:[#allocation2 + $0x28] sm:$0xff] %v1847
      %1878 = vst [vmem:[#allocation2 + $0x30] sm:$0xff] %v1848
      %1879 = vst [vmem:[#allocation2 + $0x38] sm:$0xff] %v1849
      %1880 = vst [vmem:[#allocation2 + $0x40] sm:$0xff] %v1850
      %1881 = vst [vmem:[#allocation2 + $0x48] sm:$0xff] %v1851
      %1882 = vst [vmem:[#allocation2 + $0x50] sm:$0xff] %v1852
      %1883 = vst [vmem:[#allocation2 + $0x58] sm:$0xff] %v1853
      %1884 = vst [vmem:[#allocation2 + $0x60] sm:$0xff] %v1854
      %1885 = vst [vmem:[#allocation2 + $0x68] sm:$0xff] %v1855
      %1886 = vst [vmem:[#allocation2 + $0x70] sm:$0xff] %v1856
      %1887 = vst [vmem:[#allocation2 + $0x78] sm:$0xff] %v1857
      %1888 = vst [vmem:[#allocation2 + $0x80] sm:$0xff] %v1858
      %1889 = vst [vmem:[#allocation2 + $0x88] sm:$0xff] %v1859
      %1890 = vst [vmem:[#allocation2 + $0x90] sm:$0xff] %v1860
      %1891 = vst [vmem:[#allocation2 + $0x98] sm:$0xff] %v1861
      %1892 = vst [vmem:[#allocation2 + $0xa0] sm:$0xff] %v1862
      %1893 = vst [vmem:[#allocation2 + $0xa8] sm:$0xff] %v1863
      %1894 = vst [vmem:[#allocation2 + $0xb0] sm:$0xff] %v1864
      %1895 = vst [vmem:[#allocation2 + $0xb8] sm:$0xff] %v1865
      %1896 = vst [vmem:[#allocation2 + $0xc0] sm:$0xff] %v1866
      %1897 = vst [vmem:[#allocation2 + $0xc8] sm:$0xff] %v1867
      %1898 = vst [vmem:[#allocation2 + $0xd0] sm:$0xff] %v1868
      %1899 = vst [vmem:[#allocation2 + $0xd8] sm:$0xff] %v1869
      %1900 = vst [vmem:[#allocation2 + $0xe0] sm:$0xff] %v1870
      %1901 = vst [vmem:[#allocation2 + $0xe8] sm:$0xff] %v1871
      %v1902 = vld [vmem:[#allocation2] sm:$0xff]
      %v1903 = vld [vmem:[#allocation2 + $0x8] sm:$0xff]
      %v1904 = vld [vmem:[#allocation2 + $0x10] sm:$0xff]
      %v1905 = vld [vmem:[#allocation2 + $0x18] sm:$0xff]
      %v1906 = vld [vmem:[#allocation2 + $0x20] sm:$0xff]
      %v1907 = vld [vmem:[#allocation2 + $0x28] sm:$0xff]
      %v1908 = vld [vmem:[#allocation2 + $0x30] sm:$0xff]
      %v1909 = vld [vmem:[#allocation2 + $0x38] sm:$0xff]
      %v1910 = vld [vmem:[#allocation2 + $0x40] sm:$0xff]
      %v1911 = vld [vmem:[#allocation2 + $0x48] sm:$0xff]
      %v1912 = vld [vmem:[#allocation2 + $0x50] sm:$0xff]
      %v1913 = vld [vmem:[#allocation2 + $0x58] sm:$0xff]
      %v1914 = vld [vmem:[#allocation2 + $0x60] sm:$0xff]
      %v1915 = vld [vmem:[#allocation2 + $0x68] sm:$0xff]
      %v1916 = vld [vmem:[#allocation2 + $0x70] sm:$0xff]
      %v1917 = vld [vmem:[#allocation2 + $0x78] sm:$0xff]
      %v1918 = vld [vmem:[#allocation2 + $0x80] sm:$0xff]
      %v1919 = vld [vmem:[#allocation2 + $0x88] sm:$0xff]
      %v1920 = vld [vmem:[#allocation2 + $0x90] sm:$0xff]
      %v1921 = vld [vmem:[#allocation2 + $0x98] sm:$0xff]
      %v1922 = vld [vmem:[#allocation2 + $0xa0] sm:$0xff]
      %v1923 = vld [vmem:[#allocation2 + $0xa8] sm:$0xff]
      %v1924 = vld [vmem:[#allocation2 + $0xb0] sm:$0xff]
      %v1925 = vld [vmem:[#allocation2 + $0xb8] sm:$0xff]
      %v1926 = vld [vmem:[#allocation2 + $0xc0] sm:$0xff]
      %v1927 = vld [vmem:[#allocation2 + $0xc8] sm:$0xff]
      %v1928 = vld [vmem:[#allocation2 + $0xd0] sm:$0xff]
      %v1929 = vld [vmem:[#allocation2 + $0xd8] sm:$0xff]
      %v1930 = vld [vmem:[#allocation2 + $0xe0] sm:$0xff]
      %v1931 = vld [vmem:[#allocation2 + $0xe8] sm:$0xff]
      %v1932 = vld [vmem:[#allocation2 + $0xf0] sm:$0xff]
      %v1933 = vld [vmem:[#allocation2 + $0xf8] sm:$0xff]
      %v1934 = vld [vmem:[%s4] sm:$0x1]
      %v1936 = vlaneseq
      %v1937 = vshrl.u32 %v1936, 7
      %v1938 = vsub.s32 0, %v1937
      %v1939 = vrot.slane %v1934, %v1938
      %v1941 = vadd.f32 %v1902, %v1939
      %v1942 = vadd.f32 %v1903, %v1939
      %v1943 = vadd.f32 %v1904, %v1939
      %v1944 = vadd.f32 %v1905, %v1939
      %v1945 = vadd.f32 %v1906, %v1939
      %v1946 = vadd.f32 %v1907, %v1939
      %v1947 = vadd.f32 %v1908, %v1939
      %v1948 = vadd.f32 %v1909, %v1939
      %v1949 = vadd.f32 %v1910, %v1939
      %v1950 = vadd.f32 %v1911, %v1939
      %v1951 = vadd.f32 %v1912, %v1939
      %v1952 = vadd.f32 %v1913, %v1939
      %v1953 = vadd.f32 %v1914, %v1939
      %v1954 = vadd.f32 %v1915, %v1939
      %v1955 = vadd.f32 %v1916, %v1939
      %v1956 = vadd.f32 %v1917, %v1939
      %v1957 = vadd.f32 %v1918, %v1939
      %v1958 = vadd.f32 %v1919, %v1939
      %v1959 = vadd.f32 %v1920, %v1939
      %v1960 = vadd.f32 %v1921, %v1939
      %v1961 = vadd.f32 %v1922, %v1939
      %v1962 = vadd.f32 %v1923, %v1939
      %v1963 = vadd.f32 %v1924, %v1939
      %v1964 = vadd.f32 %v1925, %v1939
      %v1965 = vadd.f32 %v1926, %v1939
      %v1966 = vadd.f32 %v1927, %v1939
      %v1967 = vadd.f32 %v1928, %v1939
      %v1968 = vadd.f32 %v1929, %v1939
      %v1969 = vadd.f32 %v1930, %v1939
      %v1970 = vadd.f32 %v1931, %v1939
      %v1971 = vadd.f32 %v1932, %v1939
      %v1972 = vadd.f32 %v1933, %v1939
      %v1973 = vmax.f32 %v1941, 0.0
      %v1974 = vmax.f32 %v1942, 0.0
      %v1975 = vmax.f32 %v1943, 0.0
      %v1976 = vmax.f32 %v1944, 0.0
      %v1977 = vmax.f32 %v1945, 0.0
      %v1978 = vmax.f32 %v1946, 0.0
      %v1979 = vmax.f32 %v1947, 0.0
      %v1980 = vmax.f32 %v1948, 0.0
      %v1981 = vmax.f32 %v1949, 0.0
      %v1982 = vmax.f32 %v1950, 0.0
      %v1983 = vmax.f32 %v1951, 0.0
      %v1984 = vmax.f32 %v1952, 0.0
      %v1985 = vmax.f32 %v1953, 0.0
      %v1986 = vmax.f32 %v1954, 0.0
      %v1987 = vmax.f32 %v1955, 0.0
      %v1988 = vmax.f32 %v1956, 0.0
      %v1989 = vmax.f32 %v1957, 0.0
      %v1990 = vmax.f32 %v1958, 0.0
      %v1991 = vmax.f32 %v1959, 0.0
      %v1992 = vmax.f32 %v1960, 0.0
      %v1993 = vmax.f32 %v1961, 0.0
      %v1994 = vmax.f32 %v1962, 0.0
      %v1995 = vmax.f32 %v1963, 0.0
      %v1996 = vmax.f32 %v1964, 0.0
      %v1997 = vmax.f32 %v1965, 0.0
      %v1998 = vmax.f32 %v1966, 0.0
      %v1999 = vmax.f32 %v1967, 0.0
      %v2000 = vmax.f32 %v1968, 0.0
      %v2001 = vmax.f32 %v1969, 0.0
      %v2002 = vmax.f32 %v1970, 0.0
      %v2003 = vmax.f32 %v1971, 0.0
      %v2004 = vmax.f32 %v1972, 0.0
      %v2005 = vmin.f32 %v1973, 6.0
      %v2006 = vmin.f32 %v1974, 6.0
      %v2007 = vmin.f32 %v1975, 6.0
      %v2008 = vmin.f32 %v1976, 6.0
      %v2009 = vmin.f32 %v1977, 6.0
      %v2010 = vmin.f32 %v1978, 6.0
      %v2011 = vmin.f32 %v1979, 6.0
      %v2012 = vmin.f32 %v1980, 6.0
      %v2013 = vmin.f32 %v1981, 6.0
      %v2014 = vmin.f32 %v1982, 6.0
      %v2015 = vmin.f32 %v1983, 6.0
      %v2016 = vmin.f32 %v1984, 6.0
      %v2017 = vmin.f32 %v1985, 6.0
      %v2018 = vmin.f32 %v1986, 6.0
      %v2019 = vmin.f32 %v1987, 6.0
      %v2020 = vmin.f32 %v1988, 6.0
      %v2021 = vmin.f32 %v1989, 6.0
      %v2022 = vmin.f32 %v1990, 6.0
      %v2023 = vmin.f32 %v1991, 6.0
      %v2024 = vmin.f32 %v1992, 6.0
      %v2025 = vmin.f32 %v1993, 6.0
      %v2026 = vmin.f32 %v1994, 6.0
      %v2027 = vmin.f32 %v1995, 6.0
      %v2028 = vmin.f32 %v1996, 6.0
      %v2029 = vmin.f32 %v1997, 6.0
      %v2030 = vmin.f32 %v1998, 6.0
      %v2031 = vmin.f32 %v1999, 6.0
      %v2032 = vmin.f32 %v2000, 6.0
      %v2033 = vmin.f32 %v2001, 6.0
      %v2034 = vmin.f32 %v2002, 6.0
      %v2035 = vmin.f32 %v2003, 6.0
      %v2036 = vmin.f32 %v2004, 6.0
      %v2037 = vpack.c.bf16 %v2006, %v2005
      %v2038 = vpack.c.bf16 %v2008, %v2007
      %v2039 = vpack.c.bf16 %v2010, %v2009
      %v2040 = vpack.c.bf16 %v2012, %v2011
      %v2041 = vpack.c.bf16 %v2014, %v2013
      %v2042 = vpack.c.bf16 %v2016, %v2015
      %v2043 = vpack.c.bf16 %v2018, %v2017
      %v2044 = vpack.c.bf16 %v2020, %v2019
      %v2045 = vpack.c.bf16 %v2022, %v2021
      %v2046 = vpack.c.bf16 %v2024, %v2023
      %v2047 = vpack.c.bf16 %v2026, %v2025
      %v2048 = vpack.c.bf16 %v2028, %v2027
      %v2049 = vpack.c.bf16 %v2030, %v2029
      %v2050 = vpack.c.bf16 %v2032, %v2031
      %v2051 = vpack.c.bf16 %v2034, %v2033
      %v2052 = vpack.c.bf16 %v2036, %v2035
      %v2053 = vld [vmem:[%s5] sm:$0xf]
      %v2054 = vld [vmem:[%s5 + $0x4] sm:$0xf]
      %v2055 = vld [vmem:[%s5 + $0x8] sm:$0xf]
      %v2056 = vld [vmem:[%s5 + $0xc] sm:$0xf]
      %v2057 = vld [vmem:[%s5 + $0x10] sm:$0xf]
      %v2058 = vld [vmem:[%s5 + $0x14] sm:$0xf]
      %v2059 = vld [vmem:[%s5 + $0x18] sm:$0xf]
      %v2060 = vld [vmem:[%s5 + $0x1c] sm:$0xf]
      %v2061 = vld [vmem:[%s5 + $0x20] sm:$0xf]
      %v2062 = vld [vmem:[%s5 + $0x24] sm:$0xf]
      %v2063 = vld [vmem:[%s5 + $0x28] sm:$0xf]
      %v2064 = vld [vmem:[%s5 + $0x2c] sm:$0xf]
      %v2065 = vld [vmem:[%s5 + $0x30] sm:$0xf]
      %v2066 = vld [vmem:[%s5 + $0x34] sm:$0xf]
      %v2067 = vld [vmem:[%s5 + $0x38] sm:$0xf]
      %v2068 = vld [vmem:[%s5 + $0x3c] sm:$0xf]
      %v2069 = vld [vmem:[%s6] sm:$0x1]
      %v2071 = vlaneseq
      %v2072 = vshrl.u32 %v2071, 7
      %v2073 = vsub.s32 0, %v2072
      %v2074 = vrot.slane %v2069, %v2073
      %v2092 = vunpack.c.l.b16 %v2053
      %v2093 = vunpack.c.l.b16 %v2054
      %v2094 = vunpack.c.l.b16 %v2055
      %v2095 = vunpack.c.l.b16 %v2056
      %v2096 = vunpack.c.l.b16 %v2057
      %v2097 = vunpack.c.l.b16 %v2058
      %v2098 = vunpack.c.l.b16 %v2059
      %v2099 = vunpack.c.l.b16 %v2060
      %v2100 = vunpack.c.l.b16 %v2061
      %v2101 = vunpack.c.l.b16 %v2062
      %v2102 = vunpack.c.l.b16 %v2063
      %v2103 = vunpack.c.l.b16 %v2064
      %v2104 = vunpack.c.l.b16 %v2065
      %v2105 = vunpack.c.l.b16 %v2066
      %v2106 = vunpack.c.l.b16 %v2067
      %v2107 = vunpack.c.l.b16 %v2068
      %v2108 = vpack.c.b16 %v2093, %v2092
      %v2109 = vpack.c.b16 %v2095, %v2094
      %v2110 = vpack.c.b16 %v2097, %v2096
      %v2111 = vpack.c.b16 %v2099, %v2098
      %v2112 = vpack.c.b16 %v2101, %v2100
      %v2113 = vpack.c.b16 %v2103, %v2102
      %v2114 = vpack.c.b16 %v2105, %v2104
      %v2115 = vpack.c.b16 %v2107, %v2106
      %2124 = vmatprep.subr.bf16.mxu0 0
      %2125 = vmatpush1.bf16.msra.mxu0 %v2108
      %2126 = vmatprep.subr.bf16.mxu0 0
      %2127 = vmatpush1.bf16.msra.mxu0 %v2109
      %2128 = vmatprep.subr.bf16.mxu0 0
      %2129 = vmatpush1.bf16.msra.mxu0 %v2110
      %2130 = vmatprep.subr.bf16.mxu0 0
      %2131 = vmatpush1.bf16.msra.mxu0 %v2111
      %2132 = vmatprep.subr.bf16.mxu0 0
      %2133 = vmatpush1.bf16.msra.mxu0 %v2112
      %2134 = vmatprep.subr.bf16.mxu0 0
      %2135 = vmatpush1.bf16.msra.mxu0 %v2113
      %2136 = vmatprep.subr.bf16.mxu0 0
      %2137 = vmatpush1.bf16.msra.mxu0 %v2114
      %2138 = vmatprep.subr.bf16.mxu0 0
      %2139 = vmatpush1.bf16.msra.mxu0 %v2115
      %2140 = vmatprep.subr.bf16.mxu0 0
      %2141 = vmatpush1.bf16.msra.mxu0 0
      %2142 = vmatprep.subr.bf16.mxu0 0
      %2143 = vmatpush1.bf16.msra.mxu0 0
      %2144 = vmatprep.subr.bf16.mxu0 0
      %2145 = vmatpush1.bf16.msra.mxu0 0
      %2146 = vmatprep.subr.bf16.mxu0 0
      %2147 = vmatpush1.bf16.msra.mxu0 0
      %2148 = vmatprep.subr.bf16.mxu0 0
      %2149 = vmatpush1.bf16.msra.mxu0 0
      %2150 = vmatprep.subr.bf16.mxu0 0
      %2151 = vmatpush1.bf16.msra.mxu0 0
      %2152 = vmatprep.subr.bf16.mxu0 0
      %2153 = vmatpush1.bf16.msra.mxu0 0
      %2154 = vmatprep.subr.bf16.mxu0 0
      %2155 = vmatpush1.bf16.msra.mxu0 0
      %2156 = vmatprep.mubr.bf16.mxu0 0
      %2157 = vmatmul.mubr.bf16.gmra.mrb[0].mxu0 %v2037
      %v2158 = vpop.f32.mrb[0].mxu0
      %v2159 = vadd.f32 %v2074, %v2158
      %v2160 = vpop.f32.mrb[0].mxu0
      %v2161 = vpop.f32.mrb[0].mxu0
      %v2162 = vadd.f32 %v2074, %v2161
      %v2163 = vpop.f32.mrb[0].mxu0
      %2164 = vmatprep.mubr.bf16.mxu0 0
      %2165 = vmatmul.mubr.bf16.gmra.mrb[0].mxu0 %v2038
      %v2166 = vpop.f32.mrb[0].mxu0
      %v2167 = vadd.f32 %v2074, %v2166
      %v2168 = vpop.f32.mrb[0].mxu0
      %v2169 = vpop.f32.mrb[0].mxu0
      %v2170 = vadd.f32 %v2074, %v2169
      %v2171 = vpop.f32.mrb[0].mxu0
      %2172 = vmatprep.mubr.bf16.mxu0 0
      %2173 = vmatmul.mubr.bf16.gmra.mrb[0].mxu0 %v2039
      %v2174 = vpop.f32.mrb[0].mxu0
      %v2175 = vadd.f32 %v2074, %v2174
      %v2176 = vpop.f32.mrb[0].mxu0
      %v2177 = vpop.f32.mrb[0].mxu0
      %v2178 = vadd.f32 %v2074, %v2177
      %v2179 = vpop.f32.mrb[0].mxu0
      %2180 = vmatprep.mubr.bf16.mxu0 0
      %2181 = vmatmul.mubr.bf16.gmra.mrb[0].mxu0 %v2040
      %v2182 = vpop.f32.mrb[0].mxu0
      %v2183 = vadd.f32 %v2074, %v2182
      %v2184 = vpop.f32.mrb[0].mxu0
      %v2185 = vpop.f32.mrb[0].mxu0
      %v2186 = vadd.f32 %v2074, %v2185
      %v2187 = vpop.f32.mrb[0].mxu0
      %2188 = vmatprep.mubr.bf16.mxu0 0
      %2189 = vmatmul.mubr.bf16.gmra.mrb[0].mxu0 %v2041
      %v2190 = vpop.f32.mrb[0].mxu0
      %v2191 = vadd.f32 %v2074, %v2190
      %v2192 = vpop.f32.mrb[0].mxu0
      %v2193 = vpop.f32.mrb[0].mxu0
      %v2194 = vadd.f32 %v2074, %v2193
      %v2195 = vpop.f32.mrb[0].mxu0
      %2196 = vmatprep.mubr.bf16.mxu0 0
      %2197 = vmatmul.mubr.bf16.gmra.mrb[0].mxu0 %v2042
      %v2198 = vpop.f32.mrb[0].mxu0
      %v2199 = vadd.f32 %v2074, %v2198
      %v2200 = vpop.f32.mrb[0].mxu0
      %v2201 = vpop.f32.mrb[0].mxu0
      %v2202 = vadd.f32 %v2074, %v2201
      %v2203 = vpop.f32.mrb[0].mxu0
      %2204 = vmatprep.mubr.bf16.mxu0 0
      %2205 = vmatmul.mubr.bf16.gmra.mrb[0].mxu0 %v2043
      %v2206 = vpop.f32.mrb[0].mxu0
      %v2207 = vadd.f32 %v2074, %v2206
      %v2208 = vpop.f32.mrb[0].mxu0
      %v2209 = vpop.f32.mrb[0].mxu0
      %v2210 = vadd.f32 %v2074, %v2209
      %v2211 = vpop.f32.mrb[0].mxu0
      %2212 = vmatprep.mubr.bf16.mxu0 0
      %2213 = vmatmul.mubr.bf16.gmra.mrb[0].mxu0 %v2044
      %v2214 = vpop.f32.mrb[0].mxu0
      %v2215 = vadd.f32 %v2074, %v2214
      %v2216 = vpop.f32.mrb[0].mxu0
      %v2217 = vpop.f32.mrb[0].mxu0
      %v2218 = vadd.f32 %v2074, %v2217
      %v2219 = vpop.f32.mrb[0].mxu0
      %2220 = vmatprep.mubr.bf16.mxu0 0
      %2221 = vmatmul.mubr.bf16.gmra.mrb[0].mxu0 %v2045
      %v2222 = vpop.f32.mrb[0].mxu0
      %v2223 = vadd.f32 %v2074, %v2222
      %v2224 = vpop.f32.mrb[0].mxu0
      %v2225 = vpop.f32.mrb[0].mxu0
      %v2226 = vadd.f32 %v2074, %v2225
      %v2227 = vpop.f32.mrb[0].mxu0
      %2228 = vmatprep.mubr.bf16.mxu0 0
      %2229 = vmatmul.mubr.bf16.gmra.mrb[0].mxu0 %v2046
      %v2230 = vpop.f32.mrb[0].mxu0
      %v2231 = vadd.f32 %v2074, %v2230
      %v2232 = vpop.f32.mrb[0].mxu0
      %v2233 = vpop.f32.mrb[0].mxu0
      %v2234 = vadd.f32 %v2074, %v2233
      %v2235 = vpop.f32.mrb[0].mxu0
      %2236 = vmatprep.mubr.bf16.mxu0 0
      %2237 = vmatmul.mubr.bf16.gmra.mrb[0].mxu0 %v2047
      %v2238 = vpop.f32.mrb[0].mxu0
      %v2239 = vadd.f32 %v2074, %v2238
      %v2240 = vpop.f32.mrb[0].mxu0
      %v2241 = vpop.f32.mrb[0].mxu0
      %v2242 = vadd.f32 %v2074, %v2241
      %v2243 = vpop.f32.mrb[0].mxu0
      %2244 = vmatprep.mubr.bf16.mxu0 0
      %2245 = vmatmul.mubr.bf16.gmra.mrb[0].mxu0 %v2048
      %v2246 = vpop.f32.mrb[0].mxu0
      %v2247 = vadd.f32 %v2074, %v2246
      %v2248 = vpop.f32.mrb[0].mxu0
      %v2249 = vpop.f32.mrb[0].mxu0
      %v2250 = vadd.f32 %v2074, %v2249
      %v2251 = vpop.f32.mrb[0].mxu0
      %2252 = vmatprep.mubr.bf16.mxu0 0
      %2253 = vmatmul.mubr.bf16.gmra.mrb[0].mxu0 %v2049
      %v2254 = vpop.f32.mrb[0].mxu0
      %v2255 = vadd.f32 %v2074, %v2254
      %v2256 = vpop.f32.mrb[0].mxu0
      %v2257 = vpop.f32.mrb[0].mxu0
      %v2258 = vadd.f32 %v2074, %v2257
      %v2259 = vpop.f32.mrb[0].mxu0
      %2260 = vmatprep.mubr.bf16.mxu0 0
      %2261 = vmatmul.mubr.bf16.gmra.mrb[0].mxu0 %v2050
      %v2262 = vpop.f32.mrb[0].mxu0
      %v2263 = vadd.f32 %v2074, %v2262
      %v2264 = vpop.f32.mrb[0].mxu0
      %v2265 = vpop.f32.mrb[0].mxu0
      %v2266 = vadd.f32 %v2074, %v2265
      %v2267 = vpop.f32.mrb[0].mxu0
      %2268 = vmatprep.mubr.bf16.mxu0 0
      %2269 = vmatmul.mubr.bf16.gmra.mrb[0].mxu0 %v2051
      %v2270 = vpop.f32.mrb[0].mxu0
      %v2271 = vadd.f32 %v2074, %v2270
      %v2272 = vpop.f32.mrb[0].mxu0
      %v2273 = vpop.f32.mrb[0].mxu0
      %v2274 = vadd.f32 %v2074, %v2273
      %v2275 = vpop.f32.mrb[0].mxu0
      %2276 = vmatprep.mubr.bf16.mxu0 0
      %2277 = vmatmul.mubr.bf16.gmra.mrb[0].mxu0 %v2052
      %v2278 = vpop.f32.mrb[0].mxu0
      %v2279 = vadd.f32 %v2074, %v2278
      %v2280 = vpop.f32.mrb[0].mxu0
      %v2281 = vpop.f32.mrb[0].mxu0
      %v2282 = vadd.f32 %v2074, %v2281
      %v2283 = vpop.f32.mrb[0].mxu0
      %2284 = vdwg.mxu0
      %v2285 = vadd.f32 %v2159, %v280
      %v2286 = vadd.f32 %v2162, %v281
      %v2287 = vadd.f32 %v2167, %v282
      %v2288 = vadd.f32 %v2170, %v283
      %v2289 = vadd.f32 %v2175, %v284
      %v2290 = vadd.f32 %v2178, %v285
      %v2291 = vadd.f32 %v2183, %v286
      %v2292 = vadd.f32 %v2186, %v287
      %v2293 = vadd.f32 %v2191, %v288
      %v2294 = vadd.f32 %v2194, %v289
      %v2295 = vadd.f32 %v2199, %v290
      %v2296 = vadd.f32 %v2202, %v291
      %v2297 = vadd.f32 %v2207, %v292
      %v2298 = vadd.f32 %v2210, %v293
      %v2299 = vadd.f32 %v2215, %v294
      %v2300 = vadd.f32 %v2218, %v295
      %v2301 = vadd.f32 %v2223, %v296
      %v2302 = vadd.f32 %v2226, %v297
      %v2303 = vadd.f32 %v2231, %v298
      %v2304 = vadd.f32 %v2234, %v299
      %v2305 = vadd.f32 %v2239, %v300
      %v2306 = vadd.f32 %v2242, %v301
      %v2307 = vadd.f32 %v2247, %v302
      %v2308 = vadd.f32 %v2250, %v303
      %v2309 = vadd.f32 %v2255, %v304
      %v2310 = vadd.f32 %v2258, %v305
      %v2311 = vadd.f32 %v2263, %v306
      %v2312 = vadd.f32 %v2266, %v307
      %v2313 = vadd.f32 %v2271, %v308
      %v2314 = vadd.f32 %v2274, %v309
      %v2315 = vadd.f32 %v2279, %v310
      %v2316 = vadd.f32 %v2282, %v311
      %2317 = vst.msk [vmem:[%s278] sm:$0xff] %vm336, %v2285
      %2318 = vst.msk [vmem:[%s278 + $0x8] sm:$0xff] %vm336, %v2286
      %2319 = vst.msk [vmem:[%s278 + $0x10] sm:$0xff] %vm336, %v2287
      %2320 = vst.msk [vmem:[%s278 + $0x18] sm:$0xff] %vm336, %v2288
      %2321 = vst.msk [vmem:[%s278 + $0x20] sm:$0xff] %vm336, %v2289
      %2322 = vst.msk [vmem:[%s278 + $0x28] sm:$0xff] %vm336, %v2290
      %2323 = vst.msk [vmem:[%s278 + $0x30] sm:$0xff] %vm336, %v2291
      %2324 = vst.msk [vmem:[%s278 + $0x38] sm:$0xff] %vm336, %v2292
      %2325 = vst.msk [vmem:[%s278 + $0x40] sm:$0xff] %vm336, %v2293
      %2326 = vst.msk [vmem:[%s278 + $0x48] sm:$0xff] %vm336, %v2294
      %2327 = vst.msk [vmem:[%s278 + $0x50] sm:$0xff] %vm336, %v2295
      %2328 = vst.msk [vmem:[%s278 + $0x58] sm:$0xff] %vm336, %v2296
      %2329 = vst.msk [vmem:[%s278 + $0x60] sm:$0xff] %vm336, %v2297
      %2330 = vst.msk [vmem:[%s278 + $0x68] sm:$0xff] %vm336, %v2298
      %2331 = vst.msk [vmem:[%s278 + $0x70] sm:$0xff] %vm336, %v2299
      %2332 = vst.msk [vmem:[%s278 + $0x78] sm:$0xff] %vm336, %v2300
      %2333 = vst.msk [vmem:[%s278 + $0x80] sm:$0xff] %vm336, %v2301
      %2334 = vst.msk [vmem:[%s278 + $0x88] sm:$0xff] %vm336, %v2302
      %2335 = vst.msk [vmem:[%s278 + $0x90] sm:$0xff] %vm336, %v2303
      %2336 = vst.msk [vmem:[%s278 + $0x98] sm:$0xff] %vm336, %v2304
      %2337 = vst.msk [vmem:[%s278 + $0xa0] sm:$0xff] %vm336, %v2305
      %2338 = vst.msk [vmem:[%s278 + $0xa8] sm:$0xff] %vm336, %v2306
      %2339 = vst.msk [vmem:[%s278 + $0xb0] sm:$0xff] %vm336, %v2307
      %2340 = vst.msk [vmem:[%s278 + $0xb8] sm:$0xff] %vm336, %v2308
      %2341 = vst.msk [vmem:[%s278 + $0xc0] sm:$0xff] %vm336, %v2309
      %2342 = vst.msk [vmem:[%s278 + $0xc8] sm:$0xff] %vm336, %v2310
      %2343 = vst.msk [vmem:[%s278 + $0xd0] sm:$0xff] %vm336, %v2311
      %2344 = vst.msk [vmem:[%s278 + $0xd8] sm:$0xff] %vm336, %v2312
      %2345 = vst.msk [vmem:[%s278 + $0xe0] sm:$0xff] %vm336, %v2313
      %2346 = vst.msk [vmem:[%s278 + $0xe8] sm:$0xff] %vm336, %v2314
      %2347 = vst.msk [vmem:[%s278 + $0xf0] sm:$0xff] %vm336, %v2315
      %2348 = vst.msk [vmem:[%s278 + $0xf8] sm:$0xff] %vm336, %v2316
      %p2349 = scmp.lt.s32.totalorder %s18, 1
      %s2350 = scalar_select %p2349, %s18, 1
      %s2351 = smul.addr %s2350, 32
      %s2352 = smul.addr %s2351, 8
      %s2353 = scalar_lea.vmem %s7, %s2352
      // Predicated region
      $region49: #{inverse_residual_block.1} parent=47 // pred_check
        %p2354 = pneg %p188
      $region50: #{inverse_residual_block.1} parent=47 // pred_check_branch
        %2356 = sbr.rel (%p2354) target = $region52
      $region51: #{inverse_residual_block.1} parent=47 // pred_region
        _
      $region52: #{inverse_residual_block.1} parent=47 // pred_fallthru
        _
    $region48: #{inverse_residual_block.1} parent=5 // pred_fallthru
      _
    %p2357 = scmp.le.s32.totalorder 2, %s13
    // Predicated region
    $region53: #{inverse_residual_block.1} parent=5 // pred_check
      %p2358 = pneg %p2357
    $region54: #{inverse_residual_block.1} parent=5 // pred_check_branch
      %2360 = sbr.rel (%p2358) target = $region56
    $region55: #{inverse_residual_block.1} parent=5 // pred_region
      %s2361 = ssub.s32 %s13, 2
      // Predicated region
      $region57: #{inverse_residual_block.1} parent=55 // pred_check
        %p2362 = pneg %p194
      $region58: #{inverse_residual_block.1} parent=55 // pred_check_branch
        %2364 = sbr.rel (%p2362) target = $region60
      $region59: #{inverse_residual_block.1} parent=55 // pred_region
        %p2365 = scmp.lt.s32.totalorder %s19, 1
        %s2366 = scalar_select %p2365, %s19, 1
        %s2367 = smul.addr %s2366, 32
        %s2368 = smul.addr %s2367, 8
        %s2369 = scalar_lea.vmem %s7, %s2368
      $region60: #{inverse_residual_block.1} parent=55 // pred_fallthru
        _
    $region56: #{inverse_residual_block.1} parent=5 // pred_fallthru
      _
  $region6: #{inverse_residual_block.1} parent=0 // loop_footer
    %s17 = sadd.s32 1, %s13
  $region7: #{inverse_residual_block.1} parent=0 // loop_footer_branch
    %12 = sbr.rel target = $region3
  $region8: #{inverse_residual_block.1} parent=0 // loop_exit
    _

</llo_original>
